<compile_context>
chip_gen: v5e
topology: v5e:2x2
jax: 0.10.0
libtpu: 0.0.40
codegen_flags: <defaults>
</compile_context>

<pallas_src>
import functools

import numpy as np
import jax
import jax.numpy as jnp
from jax import lax
from jax.experimental import pallas as pl
from jax.experimental.pallas import tpu as pltpu


def _round_up(x, m):
    return ((x + m - 1) // m) * m


# ---------------------------------------------------------------------------
# Pallas kernel: multi-layer GRU recurrence. Grid iterates over layers.
# x2d / out2d are time-major flattened (T*Bp, P), row index = t*Bp + b.
# ---------------------------------------------------------------------------
def gru_kernel(x_ref, len_ref, h0_ref, wih_ref, whh_ref, bgi_ref, bhn_ref,
               out_ref, hn_ref, gi_ref):
    l = pl.program_id(0)
    TB, P = out_ref.shape
    G = gi_ref.shape[-1]                 # 3 * P, gate order [r, z, n]
    Bp = h0_ref.shape[1]
    T = TB // Bp

    wih = wih_ref[0]                     # (P, G)  bf16
    whh = whh_ref[0]                     # (P, G)  bf16
    bgi = bgi_ref[0]                     # (1, G)  f32 (bih; bhh folded in for r,z)
    bhn = bhn_ref[0]                     # (1, P)  f32 (bhh of the n gate)
    h0 = h0_ref[0]                       # (Bp, P) f32
    lengths = len_ref[...]               # (Bp, 1) int32

    # Hoisted input projection: ONE big matmul for all timesteps of this layer.
    # Layer 0 reads the embedded input; deeper layers read the previous layer's
    # output sequence which lives in out_ref (reused as the inter-layer buffer).
    @pl.when(l == 0)
    def _():
        gi_ref[...] = (
            jnp.dot(x_ref[...], wih, preferred_element_type=jnp.float32) + bgi)

    @pl.when(l > 0)
    def _():
        gi_ref[...] = (
            jnp.dot(out_ref[...].astype(jnp.bfloat16), wih,
                    preferred_element_type=jnp.float32) + bgi)

    def step(t, h):
        row = t * Bp
        if not isinstance(row, int):
            row = pl.multiple_of(row, Bp)        # Bp is a multiple of 8 (aligned)
        gi_t = gi_ref[pl.ds(row, Bp), :]         # (Bp, G) f32, whole vregs
        gh = jnp.dot(h.astype(jnp.bfloat16), whh,
                     preferred_element_type=jnp.float32)      # (Bp, G) f32
        r = jax.nn.sigmoid(gi_t[:, 0:P] + gh[:, 0:P])
        z = jax.nn.sigmoid(gi_t[:, P:2 * P] + gh[:, P:2 * P])
        n = jnp.tanh(gi_t[:, 2 * P:3 * P] + r * (gh[:, 2 * P:3 * P] + bhn))
        h_new = n + z * (h - n)                  # == (1 - z) * n + z * h
        # pack_padded_sequence semantics: freeze hidden state past each length.
        m = (lengths > t).astype(jnp.float32)    # (Bp, 1)
        h_new = h + m * (h_new - h)
        out_ref[pl.ds(row, Bp), :] = h_new
        return h_new

    if T <= 32:
        # Fully unrolled short recurrence: straight-line code for the scheduler.
        h_fin = h0
        for t in range(T):
            h_fin = step(t, h_fin)
    else:
        h_fin = lax.fori_loop(0, T, step, h0, unroll=8)

    hn_ref[0] = h_fin


def _run_gru(x2d, len2d, h0, Wih, Whh, bgi, bhn):
    TB, P = x2d.shape
    L, _, G = Wih.shape
    Bp = h0.shape[1]
    grid_spec = pltpu.PrefetchScalarGridSpec(
        num_scalar_prefetch=0,
        grid=(L,),
        in_specs=[
            pl.BlockSpec((TB, P), lambda l: (0, 0)),         # x (resident, read at l==0)
            pl.BlockSpec((Bp, 1), lambda l: (0, 0)),         # lengths
            pl.BlockSpec((1, Bp, P), lambda l: (l, 0, 0)),   # h0 per layer
            pl.BlockSpec((1, P, G), lambda l: (l, 0, 0)),    # Wih (fused gates)
            pl.BlockSpec((1, P, G), lambda l: (l, 0, 0)),    # Whh (fused gates)
            pl.BlockSpec((1, 1, G), lambda l: (l, 0, 0)),    # bgi
            pl.BlockSpec((1, 1, P), lambda l: (l, 0, 0)),    # bhn
        ],
        out_specs=[
            pl.BlockSpec((TB, P), lambda l: (0, 0)),         # output / inter-layer buffer
            pl.BlockSpec((1, Bp, P), lambda l: (l, 0, 0)),   # h_n per layer
        ],
        scratch_shapes=[pltpu.VMEM((TB, G), jnp.float32)],   # hoisted input projections
    )
    out_shape = (jax.ShapeDtypeStruct((TB, P), jnp.float32),
                 jax.ShapeDtypeStruct((L, Bp, P), jnp.float32))
    return pl.pallas_call(
        gru_kernel,
        out_shape=out_shape,
        grid_spec=grid_spec,
        compiler_params=pltpu.CompilerParams(
            dimension_semantics=("arbitrary",)),
    )(x2d, len2d, h0, Wih, Whh, bgi, bhn)


# ---------------------------------------------------------------------------
# Parameter packing: torch-layout GRU weights -> fused, padded, lane-dense.
# ---------------------------------------------------------------------------
def pack_decoder_gru_params(embedding, w_ih, w_hh, b_ih, b_hh, hidden_size):
    """w_ih[l]: (3H, Din_l), w_hh[l]: (3H, H), b_*[l]: (3H,), gate order [r,z,n].
    Zero-padding of unused rows/columns is enforced here (correctness requirement)."""
    L = len(w_ih)
    H = hidden_size
    din0 = w_ih[0].shape[1]
    P = _round_up(max(din0, H), 128)
    G = 3 * P
    Wih = np.zeros((L, P, G), np.float32)
    Whh = np.zeros((L, P, G), np.float32)
    bgi = np.zeros((L, 1, G), np.float32)
    bhn = np.zeros((L, 1, P), np.float32)
    for l in range(L):
        din = w_ih[l].shape[1]
        wi = np.asarray(w_ih[l], np.float32)
        wh = np.asarray(w_hh[l], np.float32)
        bi = np.asarray(b_ih[l], np.float32)
        bh = np.asarray(b_hh[l], np.float32)
        for g in range(3):                                   # r, z, n
            Wih[l, :din, g * P:g * P + H] = wi[g * H:(g + 1) * H, :].T
            Whh[l, :H, g * P:g * P + H] = wh[g * H:(g + 1) * H, :].T
            if g < 2:                                        # fold bhh into r/z input bias
                bgi[l, 0, g * P:g * P + H] = bi[g * H:(g + 1) * H] + bh[g * H:(g + 1) * H]
            else:                                            # n gate: bhh stays inside r*(...)
                bgi[l, 0, g * P:g * P + H] = bi[g * H:(g + 1) * H]
                bhn[l, 0, :H] = bh[g * H:(g + 1) * H]
    return dict(
        embedding=jnp.asarray(embedding, jnp.float32),
        Wih=jnp.asarray(Wih, jnp.bfloat16),                  # bf16 MXU operands
        Whh=jnp.asarray(Whh, jnp.bfloat16),
        bgi=jnp.asarray(bgi, jnp.float32),                   # f32 elementwise (v5e-safe)
        bhn=jnp.asarray(bhn, jnp.float32),
    )


# ---------------------------------------------------------------------------
# Wrapper reproducing DecoderGRU.forward (glue in plain JAX).
# ---------------------------------------------------------------------------
@functools.partial(jax.jit, static_argnames=("hidden_size", "peephole"))
def decoder_gru_forward(params, input_sequence, lengths=None, context=None,
                        state=None, *, hidden_size, peephole=False):
    """Returns (output, h_n); the torch module returns only `output` on the context path."""
    emb = params["embedding"]
    Wih, Whh, bgi, bhn = params["Wih"], params["Whh"], params["bgi"], params["bhn"]
    L, P, _ = Wih.shape
    H = hidden_size
    B, T = input_sequence.shape

    embedded = emb[input_sequence].astype(jnp.float32)       # (B, T, E)

    if context is not None:
        if peephole:
            C = context.shape[-1]
            ctx = jnp.broadcast_to(context.astype(jnp.float32)[:, None, :], (B, T, C))
            x = jnp.concatenate([embedded, ctx], axis=-1)
            h0 = jnp.zeros((L, B, H), jnp.float32)
        else:
            x = embedded
            h0 = jnp.broadcast_to(context.astype(jnp.float32)[None], (L, B, H))
        lens = lengths.astype(jnp.int32)
    elif state is not None:
        x = embedded
        h0 = state.astype(jnp.float32)                       # (L, B, H)
        lens = jnp.full((B,), T, jnp.int32)
    else:
        raise ValueError("Must provide at least state or context")

    # Pad to the lane/sublane-dense kernel layout.
    Bp = _round_up(B, 8)
    Din = x.shape[-1]
    x_p = jnp.zeros((Bp, T, P), jnp.float32).at[:B, :, :Din].set(x)
    x2d = jnp.transpose(x_p, (1, 0, 2)).reshape(T * Bp, P).astype(jnp.bfloat16)
    len2d = jnp.zeros((Bp, 1), jnp.int32).at[:B, 0].set(lens)
    h0_p = jnp.zeros((L, Bp, P), jnp.float32).at[:, :B, :H].set(h0)

    out2d, hn_p = _run_gru(x2d, len2d, h0_p, Wih, Whh, bgi, bhn)

    out = out2d.reshape(T, Bp, P).transpose(1, 0, 2)[:B, :, :H]   # (B, T, H)
    # pad_packed_sequence: zero outputs past each sequence length.
    mask = (jnp.arange(T)[None, :] < lens[:, None]).astype(out.dtype)
    out = out * mask[:, :, None]
    h_n = hn_p[:, :B, :H]
    return out, h_n


# ---------------------------------------------------------------------------
# Pure-JAX f32 reference (mirrors torch.nn.GRU + pack/pad semantics).
# ---------------------------------------------------------------------------
def gru_reference(x, lengths, h0, w_ih, w_hh, b_ih, b_hh):
    B, T, _ = x.shape
    L = len(w_ih)
    mask = (jnp.arange(T)[None, :] < lengths[:, None]).astype(jnp.float32)   # (B, T)
    layer_in = x
    hns = []
    for l in range(L):
        wir, wiz, win = jnp.split(w_ih[l], 3, axis=0)
        whr, whz, whn = jnp.split(w_hh[l], 3, axis=0)
        bir, biz, bin_ = jnp.split(b_ih[l], 3)
        bhr, bhz, bhn_ = jnp.split(b_hh[l], 3)

        def step(h, inp):
            x_t, m_t = inp
            r = jax.nn.sigmoid(x_t @ wir.T + bir + h @ whr.T + bhr)
            z = jax.nn.sigmoid(x_t @ wiz.T + biz + h @ whz.T + bhz)
            n = jnp.tanh(x_t @ win.T + bin_ + r * (h @ whn.T + bhn_))
            h_new = (1.0 - z) * n + z * h
            h_new = m_t[:, None] * h_new + (1.0 - m_t[:, None]) * h
            return h_new, h_new

        xs = (jnp.transpose(layer_in, (1, 0, 2)), jnp.transpose(mask, (1, 0)))
        h_fin, outs = lax.scan(step, h0[l], xs)
        hns.append(h_fin)
        layer_in = jnp.transpose(outs, (1, 0, 2))
    out = layer_in * mask[:, :, None]
    return out, jnp.stack(hns)


if __name__ == "__main__":
    # Small shapes consistent with DecoderGRU(hidden=32, context=32, layers=2).
    V, E, H, C, L = 50, 32, 32, 32, 2
    B, T = 2, 8
    peephole = False                       # context used as initial hidden state

    key = jax.random.PRNGKey(0)
    keys = jax.random.split(key, 4 + 4 * L)
    bound = 1.0 / float(np.sqrt(H))

    emb_matrix = jax.random.normal(keys[0], (V, E), jnp.float32) * 0.1
    w_ih, w_hh, b_ih, b_hh = [], [], [], []
    for l in range(L):
        din = (E + C * int(peephole)) if l == 0 else H
        w_ih.append(jax.random.uniform(keys[4 + 4 * l + 0], (3 * H, din),
                                       jnp.float32, -bound, bound))
        w_hh.append(jax.random.uniform(keys[4 + 4 * l + 1], (3 * H, H),
                                       jnp.float32, -bound, bound))
        b_ih.append(jax.random.uniform(keys[4 + 4 * l + 2], (3 * H,),
                                       jnp.float32, -bound, bound))
        b_hh.append(jax.random.uniform(keys[4 + 4 * l + 3], (3 * H,),
                                       jnp.float32, -bound, bound))

    params = pack_decoder_gru_params(emb_matrix, w_ih, w_hh, b_ih, b_hh, H)

    input_ids = jax.random.randint(keys[1], (B, T), 0, V, dtype=jnp.int32)
    lengths = jnp.array([8, 5], dtype=jnp.int32)             # sorted descending
    context = jax.random.normal(keys[2], (B, C), jnp.float32) * 0.5

    # Kernel forward (context path, peephole=False -> context as initial state).
    out, h_n = decoder_gru_forward(params, input_ids, lengths=lengths,
                                   context=context, hidden_size=H,
                                   peephole=peephole)
    out = jax.block_until_ready(out)
    h_n = jax.block_until_ready(h_n)

    # Reference check (f32 reference vs bf16-MXU kernel -> loose tolerance).
    embedded = emb_matrix[input_ids]
    h0 = jnp.broadcast_to(context[None], (L, B, H))
    out_want, hn_want = gru_reference(embedded, lengths, h0, w_ih, w_hh, b_ih, b_hh)

    assert out.shape == (B, T, H) and h_n.shape == (L, B, H)
    assert jnp.allclose(out, out_want, atol=2e-2, rtol=2e-2), \
        float(jnp.max(jnp.abs(out - out_want)))
    assert jnp.allclose(h_n, hn_want, atol=2e-2, rtol=2e-2), \
        float(jnp.max(jnp.abs(h_n - hn_want)))
    print("KERNEL_OK")
</pallas_src>

<mosaic_0001>
module attributes {stable_mosaic.version = 11 : i64} {
  func.func @gru_kernel(%arg0: i32, %arg1: memref<64x128xbf16, #tpu.memory_space<vmem>>, %arg2: memref<8x1xi32, #tpu.memory_space<vmem>>, %arg3: memref<1x8x128xf32, #tpu.memory_space<vmem>>, %arg4: memref<1x128x384xbf16, #tpu.memory_space<vmem>>, %arg5: memref<1x128x384xbf16, #tpu.memory_space<vmem>>, %arg6: memref<1x1x384xf32, #tpu.memory_space<vmem>>, %arg7: memref<1x1x128xf32, #tpu.memory_space<vmem>>, %arg8: memref<64x128xf32, #tpu.memory_space<vmem>>, %arg9: memref<1x8x128xf32, #tpu.memory_space<vmem>>, %arg10: memref<64x384xf32, #tpu.memory_space<vmem>>) attributes {dimension_semantics = [#tpu.dimension_semantics<arbitrary>], iteration_bounds = array<i64: 2>, scalar_prefetch = 0 : i64, scratch_operands = 1 : i64, tpu.core_type = #tpu.core_type<tc>, window_params = [{pipeline_mode = #tpu.pipeline_mode<synchronous>, transform_indices = @transform_0, window_bounds = array<i64: 64, 128>}, {pipeline_mode = #tpu.pipeline_mode<synchronous>, transform_indices = @transform_1, window_bounds = array<i64: 8, 1>}, {transform_indices = @transform_2, window_bounds = array<i64: 1, 8, 128>}, {transform_indices = @transform_3, window_bounds = array<i64: 1, 128, 384>}, {transform_indices = @transform_4, window_bounds = array<i64: 1, 128, 384>}, {transform_indices = @transform_5, window_bounds = array<i64: 1, 1, 384>}, {transform_indices = @transform_6, window_bounds = array<i64: 1, 1, 128>}, {pipeline_mode = #tpu.pipeline_mode<synchronous>, transform_indices = @transform_7, window_bounds = array<i64: 64, 128>}, {transform_indices = @transform_8, window_bounds = array<i64: 1, 8, 128>}]} {
    %c0 = arith.constant 0 : index
    %c0_0 = arith.constant 0 : index
    %c0_1 = arith.constant 0 : index
    %0 = vector.load %arg4[%c0, %c0_0, %c0_1] : memref<1x128x384xbf16, #tpu.memory_space<vmem>>, vector<1x128x384xbf16>
    %1 = vector.shape_cast %0 : vector<1x128x384xbf16> to vector<128x384xbf16>
    %c0_2 = arith.constant 0 : index
    %c0_3 = arith.constant 0 : index
    %c0_4 = arith.constant 0 : index
    %2 = vector.load %arg5[%c0_2, %c0_3, %c0_4] : memref<1x128x384xbf16, #tpu.memory_space<vmem>>, vector<1x128x384xbf16>
    %3 = vector.shape_cast %2 : vector<1x128x384xbf16> to vector<128x384xbf16>
    %c0_5 = arith.constant 0 : index
    %c0_6 = arith.constant 0 : index
    %c0_7 = arith.constant 0 : index
    %4 = vector.load %arg6[%c0_5, %c0_6, %c0_7] : memref<1x1x384xf32, #tpu.memory_space<vmem>>, vector<1x1x384xf32>
    %5 = vector.shape_cast %4 : vector<1x1x384xf32> to vector<1x384xf32>
    %c0_8 = arith.constant 0 : index
    %c0_9 = arith.constant 0 : index
    %c0_10 = arith.constant 0 : index
    %6 = vector.load %arg7[%c0_8, %c0_9, %c0_10] : memref<1x1x128xf32, #tpu.memory_space<vmem>>, vector<1x1x128xf32>
    %7 = vector.shape_cast %6 : vector<1x1x128xf32> to vector<1x128xf32>
    %c0_11 = arith.constant 0 : index
    %c0_12 = arith.constant 0 : index
    %c0_13 = arith.constant 0 : index
    %8 = vector.load %arg3[%c0_11, %c0_12, %c0_13] : memref<1x8x128xf32, #tpu.memory_space<vmem>>, vector<1x8x128xf32>
    %9 = vector.shape_cast %8 : vector<1x8x128xf32> to vector<8x128xf32>
    %c0_14 = arith.constant 0 : index
    %c0_15 = arith.constant 0 : index
    %10 = vector.load %arg2[%c0_14, %c0_15] : memref<8x1xi32, #tpu.memory_space<vmem>>, vector<8x1xi32>
    %c0_i32 = arith.constant 0 : i32
    %11 = arith.cmpi eq, %arg0, %c0_i32 : i32
    %12 = arith.extui %11 : i1 to i32
    %c0_i32_16 = arith.constant 0 : i32
    %13 = arith.cmpi ne, %12, %c0_i32_16 : i32
    scf.if %13 {
      %c0_71 = arith.constant 0 : index
      %c0_72 = arith.constant 0 : index
      %324 = vector.load %arg1[%c0_71, %c0_72] : memref<64x128xbf16, #tpu.memory_space<vmem>>, vector<64x128xbf16>
      %cst_73 = arith.constant dense<0.000000e+00> : vector<64x384xf32>
      %325 = tpu.matmul %324, %1, %cst_73 {dimension_numbers = #tpu.dot_dimension_numbers<[1], [0], [0], [1], [0, 0, 1, 1], [], []>} : vector<64x128xbf16>, vector<128x384xbf16>, vector<64x384xf32> -> vector<64x384xf32>
      %326 = vector.broadcast %5 : vector<1x384xf32> to vector<64x384xf32>
      %327 = arith.addf %325, %326 : vector<64x384xf32>
      %c0_74 = arith.constant 0 : index
      %c0_75 = arith.constant 0 : index
      %328 = vector.load %arg10[%c0_74, %c0_75] : memref<64x384xf32, #tpu.memory_space<vmem>>, vector<64x384xf32>
      tpu.vector_store %arg10[%c0_74, %c0_75], %327 {strides = array<i32>} : memref<64x384xf32, #tpu.memory_space<vmem>>, vector<64x384xf32>,
    } else {
    }
    %c0_i32_17 = arith.constant 0 : i32
    %14 = arith.cmpi sgt, %arg0, %c0_i32_17 : i32
    %15 = arith.extui %14 : i1 to i32
    %c0_i32_18 = arith.constant 0 : i32
    %16 = arith.cmpi ne, %15, %c0_i32_18 : i32
    scf.if %16 {
      %c0_71 = arith.constant 0 : index
      %c0_72 = arith.constant 0 : index
      %324 = vector.load %arg8[%c0_71, %c0_72] : memref<64x128xf32, #tpu.memory_space<vmem>>, vector<64x128xf32>
      %325 = arith.truncf %324 : vector<64x128xf32> to vector<64x128xbf16>
      %cst_73 = arith.constant dense<0.000000e+00> : vector<64x384xf32>
      %326 = tpu.matmul %325, %1, %cst_73 {dimension_numbers = #tpu.dot_dimension_numbers<[1], [0], [0], [1], [0, 0, 1, 1], [], []>} : vector<64x128xbf16>, vector<128x384xbf16>, vector<64x384xf32> -> vector<64x384xf32>
      %327 = vector.broadcast %5 : vector<1x384xf32> to vector<64x384xf32>
      %328 = arith.addf %326, %327 : vector<64x384xf32>
      %c0_74 = arith.constant 0 : index
      %c0_75 = arith.constant 0 : index
      %329 = vector.load %arg10[%c0_74, %c0_75] : memref<64x384xf32, #tpu.memory_space<vmem>>, vector<64x384xf32>
      tpu.vector_store %arg10[%c0_74, %c0_75], %328 {strides = array<i32>} : memref<64x384xf32, #tpu.memory_space<vmem>>, vector<64x384xf32>,
    } else {
    }
    %c0_19 = arith.constant 0 : index
    %c0_20 = arith.constant 0 : index
    %17 = vector.load %arg10[%c0_19, %c0_20] : memref<64x384xf32, #tpu.memory_space<vmem>>, vector<8x384xf32>
    %18 = arith.truncf %9 : vector<8x128xf32> to vector<8x128xbf16>
    %cst = arith.constant dense<0.000000e+00> : vector<8x384xf32>
    %19 = tpu.matmul %18, %3, %cst {dimension_numbers = #tpu.dot_dimension_numbers<[1], [0], [0], [1], [0, 0, 1, 1], [], []>} : vector<8x128xbf16>, vector<128x384xbf16>, vector<8x384xf32> -> vector<8x384xf32>
    %20 = vector.extract_strided_slice %17 {offsets = [0, 0], sizes = [8, 128], strides = [1, 1]} : vector<8x384xf32> to vector<8x128xf32>
    %21 = vector.extract_strided_slice %19 {offsets = [0, 0], sizes = [8, 128], strides = [1, 1]} : vector<8x384xf32> to vector<8x128xf32>
    %22 = arith.addf %20, %21 : vector<8x128xf32>
    %23 = arith.negf %22 : vector<8x128xf32>
    %24 = math.exp %23 : vector<8x128xf32>
    %cst_21 = arith.constant 1.000000e+00 : f32
    %25 = vector.broadcast %cst_21 : f32 to vector<8x128xf32>
    %26 = arith.addf %25, %24 : vector<8x128xf32>
    %27 = arith.divf %25, %26 : vector<8x128xf32>
    %28 = vector.extract_strided_slice %17 {offsets = [0, 128], sizes = [8, 128], strides = [1, 1]} : vector<8x384xf32> to vector<8x128xf32>
    %29 = vector.extract_strided_slice %19 {offsets = [0, 128], sizes = [8, 128], strides = [1, 1]} : vector<8x384xf32> to vector<8x128xf32>
    %30 = arith.addf %28, %29 : vector<8x128xf32>
    %31 = arith.negf %30 : vector<8x128xf32>
    %32 = math.exp %31 : vector<8x128xf32>
    %cst_22 = arith.constant 1.000000e+00 : f32
    %33 = vector.broadcast %cst_22 : f32 to vector<8x128xf32>
    %34 = arith.addf %33, %32 : vector<8x128xf32>
    %35 = arith.divf %33, %34 : vector<8x128xf32>
    %36 = vector.extract_strided_slice %17 {offsets = [0, 256], sizes = [8, 128], strides = [1, 1]} : vector<8x384xf32> to vector<8x128xf32>
    %37 = vector.extract_strided_slice %19 {offsets = [0, 256], sizes = [8, 128], strides = [1, 1]} : vector<8x384xf32> to vector<8x128xf32>
    %38 = vector.broadcast %7 : vector<1x128xf32> to vector<8x128xf32>
    %39 = arith.addf %37, %38 : vector<8x128xf32>
    %40 = arith.mulf %27, %39 : vector<8x128xf32>
    %41 = arith.addf %36, %40 : vector<8x128xf32>
    %42 = math.tanh %41 : vector<8x128xf32>
    %43 = arith.subf %9, %42 : vector<8x128xf32>
    %44 = arith.mulf %35, %43 : vector<8x128xf32>
    %45 = arith.addf %42, %44 : vector<8x128xf32>
    %c0_i32_23 = arith.constant 0 : i32
    %46 = vector.broadcast %c0_i32_23 : i32 to vector<8x1xi32>
    %47 = arith.cmpi sgt, %10, %46 : vector<8x1xi32>
    %48 = arith.extui %47 : vector<8x1xi1> to vector<8x1xi32>
    %49 = arith.sitofp %48 : vector<8x1xi32> to vector<8x1xf32>
    %50 = arith.subf %45, %9 : vector<8x128xf32>
    %51 = vector.broadcast %49 : vector<8x1xf32> to vector<8x128xf32>
    %52 = arith.mulf %51, %50 : vector<8x128xf32>
    %53 = arith.addf %9, %52 : vector<8x128xf32>
    %c0_24 = arith.constant 0 : index
    %c0_25 = arith.constant 0 : index
    %54 = vector.load %arg8[%c0_24, %c0_25] : memref<64x128xf32, #tpu.memory_space<vmem>>, vector<8x128xf32>
    tpu.vector_store %arg8[%c0_24, %c0_25], %53 {strides = array<i32>} : memref<64x128xf32, #tpu.memory_space<vmem>>, vector<8x128xf32>,
    %c8 = arith.constant 8 : index
    %c0_26 = arith.constant 0 : index
    %55 = vector.load %arg10[%c8, %c0_26] : memref<64x384xf32, #tpu.memory_space<vmem>>, vector<8x384xf32>
    %56 = arith.truncf %53 : vector<8x128xf32> to vector<8x128xbf16>
    %cst_27 = arith.constant dense<0.000000e+00> : vector<8x384xf32>
    %57 = tpu.matmul %56, %3, %cst_27 {dimension_numbers = #tpu.dot_dimension_numbers<[1], [0], [0], [1], [0, 0, 1, 1], [], []>} : vector<8x128xbf16>, vector<128x384xbf16>, vector<8x384xf32> -> vector<8x384xf32>
    %58 = vector.extract_strided_slice %55 {offsets = [0, 0], sizes = [8, 128], strides = [1, 1]} : vector<8x384xf32> to vector<8x128xf32>
    %59 = vector.extract_strided_slice %57 {offsets = [0, 0], sizes = [8, 128], strides = [1, 1]} : vector<8x384xf32> to vector<8x128xf32>
    %60 = arith.addf %58, %59 : vector<8x128xf32>
    %61 = arith.negf %60 : vector<8x128xf32>
    %62 = math.exp %61 : vector<8x128xf32>
    %cst_28 = arith.constant 1.000000e+00 : f32
    %63 = vector.broadcast %cst_28 : f32 to vector<8x128xf32>
    %64 = arith.addf %63, %62 : vector<8x128xf32>
    %65 = arith.divf %63, %64 : vector<8x128xf32>
    %66 = vector.extract_strided_slice %55 {offsets = [0, 128], sizes = [8, 128], strides = [1, 1]} : vector<8x384xf32> to vector<8x128xf32>
    %67 = vector.extract_strided_slice %57 {offsets = [0, 128], sizes = [8, 128], strides = [1, 1]} : vector<8x384xf32> to vector<8x128xf32>
    %68 = arith.addf %66, %67 : vector<8x128xf32>
    %69 = arith.negf %68 : vector<8x128xf32>
    %70 = math.exp %69 : vector<8x128xf32>
    %cst_29 = arith.constant 1.000000e+00 : f32
    %71 = vector.broadcast %cst_29 : f32 to vector<8x128xf32>
    %72 = arith.addf %71, %70 : vector<8x128xf32>
    %73 = arith.divf %71, %72 : vector<8x128xf32>
    %74 = vector.extract_strided_slice %55 {offsets = [0, 256], sizes = [8, 128], strides = [1, 1]} : vector<8x384xf32> to vector<8x128xf32>
    %75 = vector.extract_strided_slice %57 {offsets = [0, 256], sizes = [8, 128], strides = [1, 1]} : vector<8x384xf32> to vector<8x128xf32>
    %76 = vector.broadcast %7 : vector<1x128xf32> to vector<8x128xf32>
    %77 = arith.addf %75, %76 : vector<8x128xf32>
    %78 = arith.mulf %65, %77 : vector<8x128xf32>
    %79 = arith.addf %74, %78 : vector<8x128xf32>
    %80 = math.tanh %79 : vector<8x128xf32>
    %81 = arith.subf %53, %80 : vector<8x128xf32>
    %82 = arith.mulf %73, %81 : vector<8x128xf32>
    %83 = arith.addf %80, %82 : vector<8x128xf32>
    %c1_i32 = arith.constant 1 : i32
    %84 = vector.broadcast %c1_i32 : i32 to vector<8x1xi32>
    %85 = arith.cmpi sgt, %10, %84 : vector<8x1xi32>
    %86 = arith.extui %85 : vector<8x1xi1> to vector<8x1xi32>
    %87 = arith.sitofp %86 : vector<8x1xi32> to vector<8x1xf32>
    %88 = arith.subf %83, %53 : vector<8x128xf32>
    %89 = vector.broadcast %87 : vector<8x1xf32> to vector<8x128xf32>
    %90 = arith.mulf %89, %88 : vector<8x128xf32>
    %91 = arith.addf %53, %90 : vector<8x128xf32>
    %c8_30 = arith.constant 8 : index
    %c0_31 = arith.constant 0 : index
    %92 = vector.load %arg8[%c8_30, %c0_31] : memref<64x128xf32, #tpu.memory_space<vmem>>, vector<8x128xf32>
    tpu.vector_store %arg8[%c8_30, %c0_31], %91 {strides = array<i32>} : memref<64x128xf32, #tpu.memory_space<vmem>>, vector<8x128xf32>,
    %c16 = arith.constant 16 : index
    %c0_32 = arith.constant 0 : index
    %93 = vector.load %arg10[%c16, %c0_32] : memref<64x384xf32, #tpu.memory_space<vmem>>, vector<8x384xf32>
    %94 = arith.truncf %91 : vector<8x128xf32> to vector<8x128xbf16>
    %cst_33 = arith.constant dense<0.000000e+00> : vector<8x384xf32>
    %95 = tpu.matmul %94, %3, %cst_33 {dimension_numbers = #tpu.dot_dimension_numbers<[1], [0], [0], [1], [0, 0, 1, 1], [], []>} : vector<8x128xbf16>, vector<128x384xbf16>, vector<8x384xf32> -> vector<8x384xf32>
    %96 = vector.extract_strided_slice %93 {offsets = [0, 0], sizes = [8, 128], strides = [1, 1]} : vector<8x384xf32> to vector<8x128xf32>
    %97 = vector.extract_strided_slice %95 {offsets = [0, 0], sizes = [8, 128], strides = [1, 1]} : vector<8x384xf32> to vector<8x128xf32>
    %98 = arith.addf %96, %97 : vector<8x128xf32>
    %99 = arith.negf %98 : vector<8x128xf32>
    %100 = math.exp %99 : vector<8x128xf32>
    %cst_34 = arith.constant 1.000000e+00 : f32
    %101 = vector.broadcast %cst_34 : f32 to vector<8x128xf32>
    %102 = arith.addf %101, %100 : vector<8x128xf32>
    %103 = arith.divf %101, %102 : vector<8x128xf32>
    %104 = vector.extract_strided_slice %93 {offsets = [0, 128], sizes = [8, 128], strides = [1, 1]} : vector<8x384xf32> to vector<8x128xf32>
    %105 = vector.extract_strided_slice %95 {offsets = [0, 128], sizes = [8, 128], strides = [1, 1]} : vector<8x384xf32> to vector<8x128xf32>
    %106 = arith.addf %104, %105 : vector<8x128xf32>
    %107 = arith.negf %106 : vector<8x128xf32>
    %108 = math.exp %107 : vector<8x128xf32>
    %cst_35 = arith.constant 1.000000e+00 : f32
    %109 = vector.broadcast %cst_35 : f32 to vector<8x128xf32>
    %110 = arith.addf %109, %108 : vector<8x128xf32>
    %111 = arith.divf %109, %110 : vector<8x128xf32>
    %112 = vector.extract_strided_slice %93 {offsets = [0, 256], sizes = [8, 128], strides = [1, 1]} : vector<8x384xf32> to vector<8x128xf32>
    %113 = vector.extract_strided_slice %95 {offsets = [0, 256], sizes = [8, 128], strides = [1, 1]} : vector<8x384xf32> to vector<8x128xf32>
    %114 = vector.broadcast %7 : vector<1x128xf32> to vector<8x128xf32>
    %115 = arith.addf %113, %114 : vector<8x128xf32>
    %116 = arith.mulf %103, %115 : vector<8x128xf32>
    %117 = arith.addf %112, %116 : vector<8x128xf32>
    %118 = math.tanh %117 : vector<8x128xf32>
    %119 = arith.subf %91, %118 : vector<8x128xf32>
    %120 = arith.mulf %111, %119 : vector<8x128xf32>
    %121 = arith.addf %118, %120 : vector<8x128xf32>
    %c2_i32 = arith.constant 2 : i32
    %122 = vector.broadcast %c2_i32 : i32 to vector<8x1xi32>
    %123 = arith.cmpi sgt, %10, %122 : vector<8x1xi32>
    %124 = arith.extui %123 : vector<8x1xi1> to vector<8x1xi32>
    %125 = arith.sitofp %124 : vector<8x1xi32> to vector<8x1xf32>
    %126 = arith.subf %121, %91 : vector<8x128xf32>
    %127 = vector.broadcast %125 : vector<8x1xf32> to vector<8x128xf32>
    %128 = arith.mulf %127, %126 : vector<8x128xf32>
    %129 = arith.addf %91, %128 : vector<8x128xf32>
    %c16_36 = arith.constant 16 : index
    %c0_37 = arith.constant 0 : index
    %130 = vector.load %arg8[%c16_36, %c0_37] : memref<64x128xf32, #tpu.memory_space<vmem>>, vector<8x128xf32>
    tpu.vector_store %arg8[%c16_36, %c0_37], %129 {strides = array<i32>} : memref<64x128xf32, #tpu.memory_space<vmem>>, vector<8x128xf32>,
    %c24 = arith.constant 24 : index
    %c0_38 = arith.constant 0 : index
    %131 = vector.load %arg10[%c24, %c0_38] : memref<64x384xf32, #tpu.memory_space<vmem>>, vector<8x384xf32>
    %132 = arith.truncf %129 : vector<8x128xf32> to vector<8x128xbf16>
    %cst_39 = arith.constant dense<0.000000e+00> : vector<8x384xf32>
    %133 = tpu.matmul %132, %3, %cst_39 {dimension_numbers = #tpu.dot_dimension_numbers<[1], [0], [0], [1], [0, 0, 1, 1], [], []>} : vector<8x128xbf16>, vector<128x384xbf16>, vector<8x384xf32> -> vector<8x384xf32>
    %134 = vector.extract_strided_slice %131 {offsets = [0, 0], sizes = [8, 128], strides = [1, 1]} : vector<8x384xf32> to vector<8x128xf32>
    %135 = vector.extract_strided_slice %133 {offsets = [0, 0], sizes = [8, 128], strides = [1, 1]} : vector<8x384xf32> to vector<8x128xf32>
    %136 = arith.addf %134, %135 : vector<8x128xf32>
    %137 = arith.negf %136 : vector<8x128xf32>
    %138 = math.exp %137 : vector<8x128xf32>
    %cst_40 = arith.constant 1.000000e+00 : f32
    %139 = vector.broadcast %cst_40 : f32 to vector<8x128xf32>
    %140 = arith.addf %139, %138 : vector<8x128xf32>
    %141 = arith.divf %139, %140 : vector<8x128xf32>
    %142 = vector.extract_strided_slice %131 {offsets = [0, 128], sizes = [8, 128], strides = [1, 1]} : vector<8x384xf32> to vector<8x128xf32>
    %143 = vector.extract_strided_slice %133 {offsets = [0, 128], sizes = [8, 128], strides = [1, 1]} : vector<8x384xf32> to vector<8x128xf32>
    %144 = arith.addf %142, %143 : vector<8x128xf32>
    %145 = arith.negf %144 : vector<8x128xf32>
    %146 = math.exp %145 : vector<8x128xf32>
    %cst_41 = arith.constant 1.000000e+00 : f32
    %147 = vector.broadcast %cst_41 : f32 to vector<8x128xf32>
    %148 = arith.addf %147, %146 : vector<8x128xf32>
    %149 = arith.divf %147, %148 : vector<8x128xf32>
    %150 = vector.extract_strided_slice %131 {offsets = [0, 256], sizes = [8, 128], strides = [1, 1]} : vector<8x384xf32> to vector<8x128xf32>
    %151 = vector.extract_strided_slice %133 {offsets = [0, 256], sizes = [8, 128], strides = [1, 1]} : vector<8x384xf32> to vector<8x128xf32>
    %152 = vector.broadcast %7 : vector<1x128xf32> to vector<8x128xf32>
    %153 = arith.addf %151, %152 : vector<8x128xf32>
    %154 = arith.mulf %141, %153 : vector<8x128xf32>
    %155 = arith.addf %150, %154 : vector<8x128xf32>
    %156 = math.tanh %155 : vector<8x128xf32>
    %157 = arith.subf %129, %156 : vector<8x128xf32>
    %158 = arith.mulf %149, %157 : vector<8x128xf32>
    %159 = arith.addf %156, %158 : vector<8x128xf32>
    %c3_i32 = arith.constant 3 : i32
    %160 = vector.broadcast %c3_i32 : i32 to vector<8x1xi32>
    %161 = arith.cmpi sgt, %10, %160 : vector<8x1xi32>
    %162 = arith.extui %161 : vector<8x1xi1> to vector<8x1xi32>
    %163 = arith.sitofp %162 : vector<8x1xi32> to vector<8x1xf32>
    %164 = arith.subf %159, %129 : vector<8x128xf32>
    %165 = vector.broadcast %163 : vector<8x1xf32> to vector<8x128xf32>
    %166 = arith.mulf %165, %164 : vector<8x128xf32>
    %167 = arith.addf %129, %166 : vector<8x128xf32>
    %c24_42 = arith.constant 24 : index
    %c0_43 = arith.constant 0 : index
    %168 = vector.load %arg8[%c24_42, %c0_43] : memref<64x128xf32, #tpu.memory_space<vmem>>, vector<8x128xf32>
    tpu.vector_store %arg8[%c24_42, %c0_43], %167 {strides = array<i32>} : memref<64x128xf32, #tpu.memory_space<vmem>>, vector<8x128xf32>,
    %c32 = arith.constant 32 : index
    %c0_44 = arith.constant 0 : index
    %169 = vector.load %arg10[%c32, %c0_44] : memref<64x384xf32, #tpu.memory_space<vmem>>, vector<8x384xf32>
    %170 = arith.truncf %167 : vector<8x128xf32> to vector<8x128xbf16>
    %cst_45 = arith.constant dense<0.000000e+00> : vector<8x384xf32>
    %171 = tpu.matmul %170, %3, %cst_45 {dimension_numbers = #tpu.dot_dimension_numbers<[1], [0], [0], [1], [0, 0, 1, 1], [], []>} : vector<8x128xbf16>, vector<128x384xbf16>, vector<8x384xf32> -> vector<8x384xf32>
    %172 = vector.extract_strided_slice %169 {offsets = [0, 0], sizes = [8, 128], strides = [1, 1]} : vector<8x384xf32> to vector<8x128xf32>
    %173 = vector.extract_strided_slice %171 {offsets = [0, 0], sizes = [8, 128], strides = [1, 1]} : vector<8x384xf32> to vector<8x128xf32>
    %174 = arith.addf %172, %173 : vector<8x128xf32>
    %175 = arith.negf %174 : vector<8x128xf32>
    %176 = math.exp %175 : vector<8x128xf32>
    %cst_46 = arith.constant 1.000000e+00 : f32
    %177 = vector.broadcast %cst_46 : f32 to vector<8x128xf32>
    %178 = arith.addf %177, %176 : vector<8x128xf32>
    %179 = arith.divf %177, %178 : vector<8x128xf32>
    %180 = vector.extract_strided_slice %169 {offsets = [0, 128], sizes = [8, 128], strides = [1, 1]} : vector<8x384xf32> to vector<8x128xf32>
    %181 = vector.extract_strided_slice %171 {offsets = [0, 128], sizes = [8, 128], strides = [1, 1]} : vector<8x384xf32> to vector<8x128xf32>
    %182 = arith.addf %180, %181 : vector<8x128xf32>
    %183 = arith.negf %182 : vector<8x128xf32>
    %184 = math.exp %183 : vector<8x128xf32>
    %cst_47 = arith.constant 1.000000e+00 : f32
    %185 = vector.broadcast %cst_47 : f32 to vector<8x128xf32>
    %186 = arith.addf %185, %184 : vector<8x128xf32>
    %187 = arith.divf %185, %186 : vector<8x128xf32>
    %188 = vector.extract_strided_slice %169 {offsets = [0, 256], sizes = [8, 128], strides = [1, 1]} : vector<8x384xf32> to vector<8x128xf32>
    %189 = vector.extract_strided_slice %171 {offsets = [0, 256], sizes = [8, 128], strides = [1, 1]} : vector<8x384xf32> to vector<8x128xf32>
    %190 = vector.broadcast %7 : vector<1x128xf32> to vector<8x128xf32>
    %191 = arith.addf %189, %190 : vector<8x128xf32>
    %192 = arith.mulf %179, %191 : vector<8x128xf32>
    %193 = arith.addf %188, %192 : vector<8x128xf32>
    %194 = math.tanh %193 : vector<8x128xf32>
    %195 = arith.subf %167, %194 : vector<8x128xf32>
    %196 = arith.mulf %187, %195 : vector<8x128xf32>
    %197 = arith.addf %194, %196 : vector<8x128xf32>
    %c4_i32 = arith.constant 4 : i32
    %198 = vector.broadcast %c4_i32 : i32 to vector<8x1xi32>
    %199 = arith.cmpi sgt, %10, %198 : vector<8x1xi32>
    %200 = arith.extui %199 : vector<8x1xi1> to vector<8x1xi32>
    %201 = arith.sitofp %200 : vector<8x1xi32> to vector<8x1xf32>
    %202 = arith.subf %197, %167 : vector<8x128xf32>
    %203 = vector.broadcast %201 : vector<8x1xf32> to vector<8x128xf32>
    %204 = arith.mulf %203, %202 : vector<8x128xf32>
    %205 = arith.addf %167, %204 : vector<8x128xf32>
    %c32_48 = arith.constant 32 : index
    %c0_49 = arith.constant 0 : index
    %206 = vector.load %arg8[%c32_48, %c0_49] : memref<64x128xf32, #tpu.memory_space<vmem>>, vector<8x128xf32>
    tpu.vector_store %arg8[%c32_48, %c0_49], %205 {strides = array<i32>} : memref<64x128xf32, #tpu.memory_space<vmem>>, vector<8x128xf32>,
    %c40 = arith.constant 40 : index
    %c0_50 = arith.constant 0 : index
    %207 = vector.load %arg10[%c40, %c0_50] : memref<64x384xf32, #tpu.memory_space<vmem>>, vector<8x384xf32>
    %208 = arith.truncf %205 : vector<8x128xf32> to vector<8x128xbf16>
    %cst_51 = arith.constant dense<0.000000e+00> : vector<8x384xf32>
    %209 = tpu.matmul %208, %3, %cst_51 {dimension_numbers = #tpu.dot_dimension_numbers<[1], [0], [0], [1], [0, 0, 1, 1], [], []>} : vector<8x128xbf16>, vector<128x384xbf16>, vector<8x384xf32> -> vector<8x384xf32>
    %210 = vector.extract_strided_slice %207 {offsets = [0, 0], sizes = [8, 128], strides = [1, 1]} : vector<8x384xf32> to vector<8x128xf32>
    %211 = vector.extract_strided_slice %209 {offsets = [0, 0], sizes = [8, 128], strides = [1, 1]} : vector<8x384xf32> to vector<8x128xf32>
    %212 = arith.addf %210, %211 : vector<8x128xf32>
    %213 = arith.negf %212 : vector<8x128xf32>
    %214 = math.exp %213 : vector<8x128xf32>
    %cst_52 = arith.constant 1.000000e+00 : f32
    %215 = vector.broadcast %cst_52 : f32 to vector<8x128xf32>
    %216 = arith.addf %215, %214 : vector<8x128xf32>
    %217 = arith.divf %215, %216 : vector<8x128xf32>
    %218 = vector.extract_strided_slice %207 {offsets = [0, 128], sizes = [8, 128], strides = [1, 1]} : vector<8x384xf32> to vector<8x128xf32>
    %219 = vector.extract_strided_slice %209 {offsets = [0, 128], sizes = [8, 128], strides = [1, 1]} : vector<8x384xf32> to vector<8x128xf32>
    %220 = arith.addf %218, %219 : vector<8x128xf32>
    %221 = arith.negf %220 : vector<8x128xf32>
    %222 = math.exp %221 : vector<8x128xf32>
    %cst_53 = arith.constant 1.000000e+00 : f32
    %223 = vector.broadcast %cst_53 : f32 to vector<8x128xf32>
    %224 = arith.addf %223, %222 : vector<8x128xf32>
    %225 = arith.divf %223, %224 : vector<8x128xf32>
    %226 = vector.extract_strided_slice %207 {offsets = [0, 256], sizes = [8, 128], strides = [1, 1]} : vector<8x384xf32> to vector<8x128xf32>
    %227 = vector.extract_strided_slice %209 {offsets = [0, 256], sizes = [8, 128], strides = [1, 1]} : vector<8x384xf32> to vector<8x128xf32>
    %228 = vector.broadcast %7 : vector<1x128xf32> to vector<8x128xf32>
    %229 = arith.addf %227, %228 : vector<8x128xf32>
    %230 = arith.mulf %217, %229 : vector<8x128xf32>
    %231 = arith.addf %226, %230 : vector<8x128xf32>
    %232 = math.tanh %231 : vector<8x128xf32>
    %233 = arith.subf %205, %232 : vector<8x128xf32>
    %234 = arith.mulf %225, %233 : vector<8x128xf32>
    %235 = arith.addf %232, %234 : vector<8x128xf32>
    %c5_i32 = arith.constant 5 : i32
    %236 = vector.broadcast %c5_i32 : i32 to vector<8x1xi32>
    %237 = arith.cmpi sgt, %10, %236 : vector<8x1xi32>
    %238 = arith.extui %237 : vector<8x1xi1> to vector<8x1xi32>
    %239 = arith.sitofp %238 : vector<8x1xi32> to vector<8x1xf32>
    %240 = arith.subf %235, %205 : vector<8x128xf32>
    %241 = vector.broadcast %239 : vector<8x1xf32> to vector<8x128xf32>
    %242 = arith.mulf %241, %240 : vector<8x128xf32>
    %243 = arith.addf %205, %242 : vector<8x128xf32>
    %c40_54 = arith.constant 40 : index
    %c0_55 = arith.constant 0 : index
    %244 = vector.load %arg8[%c40_54, %c0_55] : memref<64x128xf32, #tpu.memory_space<vmem>>, vector<8x128xf32>
    tpu.vector_store %arg8[%c40_54, %c0_55], %243 {strides = array<i32>} : memref<64x128xf32, #tpu.memory_space<vmem>>, vector<8x128xf32>,
    %c48 = arith.constant 48 : index
    %c0_56 = arith.constant 0 : index
    %245 = vector.load %arg10[%c48, %c0_56] : memref<64x384xf32, #tpu.memory_space<vmem>>, vector<8x384xf32>
    %246 = arith.truncf %243 : vector<8x128xf32> to vector<8x128xbf16>
    %cst_57 = arith.constant dense<0.000000e+00> : vector<8x384xf32>
    %247 = tpu.matmul %246, %3, %cst_57 {dimension_numbers = #tpu.dot_dimension_numbers<[1], [0], [0], [1], [0, 0, 1, 1], [], []>} : vector<8x128xbf16>, vector<128x384xbf16>, vector<8x384xf32> -> vector<8x384xf32>
    %248 = vector.extract_strided_slice %245 {offsets = [0, 0], sizes = [8, 128], strides = [1, 1]} : vector<8x384xf32> to vector<8x128xf32>
    %249 = vector.extract_strided_slice %247 {offsets = [0, 0], sizes = [8, 128], strides = [1, 1]} : vector<8x384xf32> to vector<8x128xf32>
    %250 = arith.addf %248, %249 : vector<8x128xf32>
    %251 = arith.negf %250 : vector<8x128xf32>
    %252 = math.exp %251 : vector<8x128xf32>
    %cst_58 = arith.constant 1.000000e+00 : f32
    %253 = vector.broadcast %cst_58 : f32 to vector<8x128xf32>
    %254 = arith.addf %253, %252 : vector<8x128xf32>
    %255 = arith.divf %253, %254 : vector<8x128xf32>
    %256 = vector.extract_strided_slice %245 {offsets = [0, 128], sizes = [8, 128], strides = [1, 1]} : vector<8x384xf32> to vector<8x128xf32>
    %257 = vector.extract_strided_slice %247 {offsets = [0, 128], sizes = [8, 128], strides = [1, 1]} : vector<8x384xf32> to vector<8x128xf32>
    %258 = arith.addf %256, %257 : vector<8x128xf32>
    %259 = arith.negf %258 : vector<8x128xf32>
    %260 = math.exp %259 : vector<8x128xf32>
    %cst_59 = arith.constant 1.000000e+00 : f32
    %261 = vector.broadcast %cst_59 : f32 to vector<8x128xf32>
    %262 = arith.addf %261, %260 : vector<8x128xf32>
    %263 = arith.divf %261, %262 : vector<8x128xf32>
    %264 = vector.extract_strided_slice %245 {offsets = [0, 256], sizes = [8, 128], strides = [1, 1]} : vector<8x384xf32> to vector<8x128xf32>
    %265 = vector.extract_strided_slice %247 {offsets = [0, 256], sizes = [8, 128], strides = [1, 1]} : vector<8x384xf32> to vector<8x128xf32>
    %266 = vector.broadcast %7 : vector<1x128xf32> to vector<8x128xf32>
    %267 = arith.addf %265, %266 : vector<8x128xf32>
    %268 = arith.mulf %255, %267 : vector<8x128xf32>
    %269 = arith.addf %264, %268 : vector<8x128xf32>
    %270 = math.tanh %269 : vector<8x128xf32>
    %271 = arith.subf %243, %270 : vector<8x128xf32>
    %272 = arith.mulf %263, %271 : vector<8x128xf32>
    %273 = arith.addf %270, %272 : vector<8x128xf32>
    %c6_i32 = arith.constant 6 : i32
    %274 = vector.broadcast %c6_i32 : i32 to vector<8x1xi32>
    %275 = arith.cmpi sgt, %10, %274 : vector<8x1xi32>
    %276 = arith.extui %275 : vector<8x1xi1> to vector<8x1xi32>
    %277 = arith.sitofp %276 : vector<8x1xi32> to vector<8x1xf32>
    %278 = arith.subf %273, %243 : vector<8x128xf32>
    %279 = vector.broadcast %277 : vector<8x1xf32> to vector<8x128xf32>
    %280 = arith.mulf %279, %278 : vector<8x128xf32>
    %281 = arith.addf %243, %280 : vector<8x128xf32>
    %c48_60 = arith.constant 48 : index
    %c0_61 = arith.constant 0 : index
    %282 = vector.load %arg8[%c48_60, %c0_61] : memref<64x128xf32, #tpu.memory_space<vmem>>, vector<8x128xf32>
    tpu.vector_store %arg8[%c48_60, %c0_61], %281 {strides = array<i32>} : memref<64x128xf32, #tpu.memory_space<vmem>>, vector<8x128xf32>,
    %c56 = arith.constant 56 : index
    %c0_62 = arith.constant 0 : index
    %283 = vector.load %arg10[%c56, %c0_62] : memref<64x384xf32, #tpu.memory_space<vmem>>, vector<8x384xf32>
    %284 = arith.truncf %281 : vector<8x128xf32> to vector<8x128xbf16>
    %cst_63 = arith.constant dense<0.000000e+00> : vector<8x384xf32>
    %285 = tpu.matmul %284, %3, %cst_63 {dimension_numbers = #tpu.dot_dimension_numbers<[1], [0], [0], [1], [0, 0, 1, 1], [], []>} : vector<8x128xbf16>, vector<128x384xbf16>, vector<8x384xf32> -> vector<8x384xf32>
    %286 = vector.extract_strided_slice %283 {offsets = [0, 0], sizes = [8, 128], strides = [1, 1]} : vector<8x384xf32> to vector<8x128xf32>
    %287 = vector.extract_strided_slice %285 {offsets = [0, 0], sizes = [8, 128], strides = [1, 1]} : vector<8x384xf32> to vector<8x128xf32>
    %288 = arith.addf %286, %287 : vector<8x128xf32>
    %289 = arith.negf %288 : vector<8x128xf32>
    %290 = math.exp %289 : vector<8x128xf32>
    %cst_64 = arith.constant 1.000000e+00 : f32
    %291 = vector.broadcast %cst_64 : f32 to vector<8x128xf32>
    %292 = arith.addf %291, %290 : vector<8x128xf32>
    %293 = arith.divf %291, %292 : vector<8x128xf32>
    %294 = vector.extract_strided_slice %283 {offsets = [0, 128], sizes = [8, 128], strides = [1, 1]} : vector<8x384xf32> to vector<8x128xf32>
    %295 = vector.extract_strided_slice %285 {offsets = [0, 128], sizes = [8, 128], strides = [1, 1]} : vector<8x384xf32> to vector<8x128xf32>
    %296 = arith.addf %294, %295 : vector<8x128xf32>
    %297 = arith.negf %296 : vector<8x128xf32>
    %298 = math.exp %297 : vector<8x128xf32>
    %cst_65 = arith.constant 1.000000e+00 : f32
    %299 = vector.broadcast %cst_65 : f32 to vector<8x128xf32>
    %300 = arith.addf %299, %298 : vector<8x128xf32>
    %301 = arith.divf %299, %300 : vector<8x128xf32>
    %302 = vector.extract_strided_slice %283 {offsets = [0, 256], sizes = [8, 128], strides = [1, 1]} : vector<8x384xf32> to vector<8x128xf32>
    %303 = vector.extract_strided_slice %285 {offsets = [0, 256], sizes = [8, 128], strides = [1, 1]} : vector<8x384xf32> to vector<8x128xf32>
    %304 = vector.broadcast %7 : vector<1x128xf32> to vector<8x128xf32>
    %305 = arith.addf %303, %304 : vector<8x128xf32>
    %306 = arith.mulf %293, %305 : vector<8x128xf32>
    %307 = arith.addf %302, %306 : vector<8x128xf32>
    %308 = math.tanh %307 : vector<8x128xf32>
    %309 = arith.subf %281, %308 : vector<8x128xf32>
    %310 = arith.mulf %301, %309 : vector<8x128xf32>
    %311 = arith.addf %308, %310 : vector<8x128xf32>
    %c7_i32 = arith.constant 7 : i32
    %312 = vector.broadcast %c7_i32 : i32 to vector<8x1xi32>
    %313 = arith.cmpi sgt, %10, %312 : vector<8x1xi32>
    %314 = arith.extui %313 : vector<8x1xi1> to vector<8x1xi32>
    %315 = arith.sitofp %314 : vector<8x1xi32> to vector<8x1xf32>
    %316 = arith.subf %311, %281 : vector<8x128xf32>
    %317 = vector.broadcast %315 : vector<8x1xf32> to vector<8x128xf32>
    %318 = arith.mulf %317, %316 : vector<8x128xf32>
    %319 = arith.addf %281, %318 : vector<8x128xf32>
    %c56_66 = arith.constant 56 : index
    %c0_67 = arith.constant 0 : index
    %320 = vector.load %arg8[%c56_66, %c0_67] : memref<64x128xf32, #tpu.memory_space<vmem>>, vector<8x128xf32>
    tpu.vector_store %arg8[%c56_66, %c0_67], %319 {strides = array<i32>} : memref<64x128xf32, #tpu.memory_space<vmem>>, vector<8x128xf32>,
    %c0_68 = arith.constant 0 : index
    %c0_69 = arith.constant 0 : index
    %c0_70 = arith.constant 0 : index
    %321 = vector.load %arg9[%c0_68, %c0_69, %c0_70] : memref<1x8x128xf32, #tpu.memory_space<vmem>>, vector<1x8x128xf32>
    %322 = vector.shape_cast %321 : vector<1x8x128xf32> to vector<8x128xf32>
    %323 = vector.shape_cast %319 : vector<8x128xf32> to vector<1x8x128xf32>
    tpu.vector_store %arg9[%c0_68, %c0_69, %c0_70], %323 {strides = array<i32>} : memref<1x8x128xf32, #tpu.memory_space<vmem>>, vector<1x8x128xf32>,
    return
  }
  func.func @transform_0(%arg0: i32) -> (i32, i32) {
    %c0_i32 = arith.constant 0 : i32
    %c0_i32_0 = arith.constant 0 : i32
    %c0_i32_1 = arith.constant 0 : i32
    return %c0_i32, %c0_i32_0 : i32, i32
  }
  func.func @transform_1(%arg0: i32) -> (i32, i32) {
    %c0_i32 = arith.constant 0 : i32
    %c0_i32_0 = arith.constant 0 : i32
    %c0_i32_1 = arith.constant 0 : i32
    return %c0_i32, %c0_i32_0 : i32, i32
  }
  func.func @transform_2(%arg0: i32) -> (i32, i32, i32) {
    %c0_i32 = arith.constant 0 : i32
    %c0_i32_0 = arith.constant 0 : i32
    %c0_i32_1 = arith.constant 0 : i32
    return %arg0, %c0_i32, %c0_i32_0 : i32, i32, i32
  }
  func.func @transform_3(%arg0: i32) -> (i32, i32, i32) {
    %c0_i32 = arith.constant 0 : i32
    %c0_i32_0 = arith.constant 0 : i32
    %c0_i32_1 = arith.constant 0 : i32
    return %arg0, %c0_i32, %c0_i32_0 : i32, i32, i32
  }
  func.func @transform_4(%arg0: i32) -> (i32, i32, i32) {
    %c0_i32 = arith.constant 0 : i32
    %c0_i32_0 = arith.constant 0 : i32
    %c0_i32_1 = arith.constant 0 : i32
    return %arg0, %c0_i32, %c0_i32_0 : i32, i32, i32
  }
  func.func @transform_5(%arg0: i32) -> (i32, i32, i32) {
    %c0_i32 = arith.constant 0 : i32
    %c0_i32_0 = arith.constant 0 : i32
    %c0_i32_1 = arith.constant 0 : i32
    return %arg0, %c0_i32, %c0_i32_0 : i32, i32, i32
  }
  func.func @transform_6(%arg0: i32) -> (i32, i32, i32) {
    %c0_i32 = arith.constant 0 : i32
    %c0_i32_0 = arith.constant 0 : i32
    %c0_i32_1 = arith.constant 0 : i32
    return %arg0, %c0_i32, %c0_i32_0 : i32, i32, i32
  }
  func.func @transform_7(%arg0: i32) -> (i32, i32) {
    %c0_i32 = arith.constant 0 : i32
    %c0_i32_0 = arith.constant 0 : i32
    %c0_i32_1 = arith.constant 0 : i32
    return %c0_i32, %c0_i32_0 : i32, i32
  }
  func.func @transform_8(%arg0: i32) -> (i32, i32, i32) {
    %c0_i32 = arith.constant 0 : i32
    %c0_i32_0 = arith.constant 0 : i32
    %c0_i32_1 = arith.constant 0 : i32
    return %arg0, %c0_i32, %c0_i32_0 : i32, i32, i32
  }
}

</mosaic_0001>

<llo_original>
// kernel: decoder_gru_forward.1
$region0: #{decoder_gru_forward.1}
  #allocation0 [shape = 'u32[]', space=smem, size = 0x4, offset = 0x4, fixed_abs, tag = 'smem constant byte address 0x4 - core index']
  #allocation1 [shape = 'u32[72,128]{1,0:T(1,128)}', space=vmem, size = 0x9000, scoped, tag = 'internal scratch']
  #allocation2 [shape = 'f32[64,384]{1,0:T(8,128)}', space=vmem, size = 0x18000, scoped, tag = 'scratch operand']
  %s0 = inlined_call_operand.vmem [shape: bf16[64,128], index: 0, kind: input, shape index: {}]
  %s1 = inlined_call_operand.vmem [shape: s32[8,1], index: 1, kind: input, shape index: {}]
  %s2 = inlined_call_operand.vmem [shape: f32[2,8,128], index: 2, kind: input, shape index: {}]
  %s3 = inlined_call_operand.hbm [shape: bf16[2,128,384], index: 3, kind: input, shape index: {}]
  %s4 = inlined_call_operand.hbm [shape: bf16[2,128,384], index: 4, kind: input, shape index: {}]
  %s5 = inlined_call_operand.vmem [shape: f32[2,1,384], index: 5, kind: input, shape index: {}]
  %s6 = inlined_call_operand.vmem [shape: f32[2,1,128], index: 6, kind: input, shape index: {}]
  %s7 = inlined_call_operand.vmem [shape: f32[64,128], index: 7, kind: output, shape index: {0}]
  %s8 = inlined_call_operand.vmem [shape: f32[2,8,128], index: 8, kind: output, shape index: {1}]
  %9 = xla_tuple %s7, %s8
  %s10 = sld [smem:[#allocation0]]
  $region85: #{decoder_gru_forward.1} parent=0
    _
  %s12 = ssub.s32 1, %s10
  %s13 = scalar_select 0, %s12, %s10
  $region1: #{decoder_gru_forward.1} parent=0
    #allocation3 [shape = 'u8[196608]{0}', space=vmem, size = 0x30000, scoped, tag = 'input window, operand 3']
    #allocation4 [shape = 's32[2]{0}', space=sflag, size = 0x8, scoped, tag = 'scoped memory for decoder_gru_forward.1']
    #allocation5 [shape = 'u8[196608]{0}', space=vmem, size = 0x30000, scoped, tag = 'input window, operand 4']
    #allocation6 [shape = 's32[2]{0}', space=sflag, size = 0x8, scoped, tag = 'scoped memory for decoder_gru_forward.1']
    %14 = vsyncpa [#allocation4], 0
    %s15 = scalar_lea.sflag [#allocation4], 1
    %16 = vsyncpa %s15, 0
    %17 = vsyncpa [#allocation6], 0
    %s18 = scalar_lea.sflag [#allocation6], 1
    %19 = vsyncpa %s18, 0
    loop: start=0, step=1, limit=4
    $region2: #{decoder_gru_forward.1} parent=1 // loop_pre_header
      _
    $region3: #{decoder_gru_forward.1} parent=1 // loop_header
      %s21 = sphi 0, %s25
      %p22 = scmp.ge.s32.totalorder %s21, 4
      %s29 = sphi 0, %s29
      %s31 = sphi 0, %s29
      %s32 = sphi 0, %s31
      %s46 = sphi 0, %s32
      %s50 = sphi 0, %s50
      %s52 = sphi 0, %s50
      %s53 = sphi 0, %s52
      %s67 = sphi 0, %s53
      %s73 = sphi 0, %s75
      %s76 = sphi 0, %s73
      %s77 = sphi 0, %s76
      %s93 = sphi 0, %s77
      %s99 = sphi 0, %s101
      %s102 = sphi 0, %s99
      %s103 = sphi 0, %s102
      %s119 = sphi 0, %s103
      %s125 = sphi 0, %s127
      %s128 = sphi 0, %s125
      %s129 = sphi 0, %s128
      %s145 = sphi 0, %s129
      %s151 = sphi 0, %s153
      %s154 = sphi 0, %s151
      %s155 = sphi 0, %s154
      %s171 = sphi 0, %s155
      %s177 = sphi 0, %s179
      %s180 = sphi 0, %s177
      %s181 = sphi 0, %s180
      %s197 = sphi 0, %s181
      %s201 = sphi 0, %s201
      %s203 = sphi 0, %s201
      %s204 = sphi 0, %s203
      %s218 = sphi 0, %s204
      %s224 = sphi 0, %s226
      %s227 = sphi 0, %s224
      %s228 = sphi 0, %s227
      %s244 = sphi 0, %s228
    $region4: #{decoder_gru_forward.1} parent=1 // loop_header_branch
      %24 = sbr.rel (%p22) target = $region8
    $region5: #{decoder_gru_forward.1} parent=1 // loop_body
      %s26 = ssub.s32 %s21, 1
      %s27 = ssub.s32 %s21, 2
      %s28 = sadd.s32 %s21, 1
      %s30 = sadd.s32 %s29, 1
      %p33 = scmp.eq.s32.totalorder %s21, 1
      %p34 = scmp.ne.s32.totalorder %s29, %s31
      %p35 = scmp.eq.s32.totalorder %s21, 0
      %p36 = por %p34, %p35
      %p37 = scmp.ne.s32.totalorder %s29, %s31
      %p38 = scmp.eq.s32.totalorder %s26, 1
      %p39 = por %p37, %p38
      %p40 = scmp.ne.s32.totalorder %s31, %s32
      %p41 = scmp.eq.s32.totalorder %s26, 0
      %p42 = por %p40, %p41
      %p43 = scmp.ne.s32.totalorder %s31, %s32
      %p44 = scmp.eq.s32.totalorder %s27, 1
      %p45 = por %p43, %p44
      %p47 = scmp.ne.s32.totalorder %s32, %s46
      %p48 = scmp.eq.s32.totalorder %s27, 0
      %p49 = por %p47, %p48
      %s51 = sadd.s32 %s50, 1
      %p54 = scmp.eq.s32.totalorder %s21, 1
      %p55 = scmp.ne.s32.totalorder %s50, %s52
      %p56 = scmp.eq.s32.totalorder %s21, 0
      %p57 = por %p55, %p56
      %p58 = scmp.ne.s32.totalorder %s50, %s52
      %p59 = scmp.eq.s32.totalorder %s26, 1
      %p60 = por %p58, %p59
      %p61 = scmp.ne.s32.totalorder %s52, %s53
      %p62 = scmp.eq.s32.totalorder %s26, 0
      %p63 = por %p61, %p62
      %p64 = scmp.ne.s32.totalorder %s52, %s53
      %p65 = scmp.eq.s32.totalorder %s27, 1
      %p66 = por %p64, %p65
      %p68 = scmp.ne.s32.totalorder %s53, %s67
      %p69 = scmp.eq.s32.totalorder %s27, 0
      %p70 = por %p68, %p69
      %s71 = ssub.s32 %s21, %s28
      %p72 = scmp.eq.s32.totalorder %s71, 0
      %s74 = sadd.s32 %s73, 1
      %s75 = scalar_select %p72, %s73, %s74
      %p78 = pneg %p72
      %p79 = scmp.eq.s32.totalorder %s21, 1
      %p80 = por %p78, %p79
      %p81 = scmp.ne.s32.totalorder %s73, %s76
      %p82 = scmp.eq.s32.totalorder %s21, 0
      %p83 = por %p81, %p82
      %p84 = scmp.ne.s32.totalorder %s73, %s76
      %p85 = scmp.eq.s32.totalorder %s26, 1
      %p86 = por %p84, %p85
      %p87 = scmp.ne.s32.totalorder %s76, %s77
      %p88 = scmp.eq.s32.totalorder %s26, 0
      %p89 = por %p87, %p88
      %p90 = scmp.ne.s32.totalorder %s76, %s77
      %p91 = scmp.eq.s32.totalorder %s27, 1
      %p92 = por %p90, %p91
      %p94 = scmp.ne.s32.totalorder %s77, %s93
      %p95 = scmp.eq.s32.totalorder %s27, 0
      %p96 = por %p94, %p95
      %s97 = ssub.s32 %s21, %s28
      %p98 = scmp.eq.s32.totalorder %s97, 0
      %s100 = sadd.s32 %s99, 1
      %s101 = scalar_select %p98, %s99, %s100
      %p104 = pneg %p98
      %p105 = scmp.eq.s32.totalorder %s21, 1
      %p106 = por %p104, %p105
      %p107 = scmp.ne.s32.totalorder %s99, %s102
      %p108 = scmp.eq.s32.totalorder %s21, 0
      %p109 = por %p107, %p108
      %p110 = scmp.ne.s32.totalorder %s99, %s102
      %p111 = scmp.eq.s32.totalorder %s26, 1
      %p112 = por %p110, %p111
      %p113 = scmp.ne.s32.totalorder %s102, %s103
      %p114 = scmp.eq.s32.totalorder %s26, 0
      %p115 = por %p113, %p114
      %p116 = scmp.ne.s32.totalorder %s102, %s103
      %p117 = scmp.eq.s32.totalorder %s27, 1
      %p118 = por %p116, %p117
      %p120 = scmp.ne.s32.totalorder %s103, %s119
      %p121 = scmp.eq.s32.totalorder %s27, 0
      %p122 = por %p120, %p121
      %s123 = ssub.s32 %s21, %s28
      %p124 = scmp.eq.s32.totalorder %s123, 0
      %s126 = sadd.s32 %s125, 1
      %s127 = scalar_select %p124, %s125, %s126
      %p130 = pneg %p124
      %p131 = scmp.eq.s32.totalorder %s21, 1
      %p132 = por %p130, %p131
      %p133 = scmp.ne.s32.totalorder %s125, %s128
      %p134 = scmp.eq.s32.totalorder %s21, 0
      %p135 = por %p133, %p134
      %p136 = scmp.ne.s32.totalorder %s125, %s128
      %p137 = scmp.eq.s32.totalorder %s26, 1
      %p138 = por %p136, %p137
      %p139 = scmp.ne.s32.totalorder %s128, %s129
      %p140 = scmp.eq.s32.totalorder %s26, 0
      %p141 = por %p139, %p140
      %p142 = scmp.ne.s32.totalorder %s128, %s129
      %p143 = scmp.eq.s32.totalorder %s27, 1
      %p144 = por %p142, %p143
      %p146 = scmp.ne.s32.totalorder %s129, %s145
      %p147 = scmp.eq.s32.totalorder %s27, 0
      %p148 = por %p146, %p147
      %s149 = ssub.s32 %s21, %s28
      %p150 = scmp.eq.s32.totalorder %s149, 0
      %s152 = sadd.s32 %s151, 1
      %s153 = scalar_select %p150, %s151, %s152
      %p156 = pneg %p150
      %p157 = scmp.eq.s32.totalorder %s21, 1
      %p158 = por %p156, %p157
      %p159 = scmp.ne.s32.totalorder %s151, %s154
      %p160 = scmp.eq.s32.totalorder %s21, 0
      %p161 = por %p159, %p160
      %p162 = scmp.ne.s32.totalorder %s151, %s154
      %p163 = scmp.eq.s32.totalorder %s26, 1
      %p164 = por %p162, %p163
      %p165 = scmp.ne.s32.totalorder %s154, %s155
      %p166 = scmp.eq.s32.totalorder %s26, 0
      %p167 = por %p165, %p166
      %p168 = scmp.ne.s32.totalorder %s154, %s155
      %p169 = scmp.eq.s32.totalorder %s27, 1
      %p170 = por %p168, %p169
      %p172 = scmp.ne.s32.totalorder %s155, %s171
      %p173 = scmp.eq.s32.totalorder %s27, 0
      %p174 = por %p172, %p173
      %s175 = ssub.s32 %s21, %s28
      %p176 = scmp.eq.s32.totalorder %s175, 0
      %s178 = sadd.s32 %s177, 1
      %s179 = scalar_select %p176, %s177, %s178
      %p182 = pneg %p176
      %p183 = scmp.eq.s32.totalorder %s21, 1
      %p184 = por %p182, %p183
      %p185 = scmp.ne.s32.totalorder %s177, %s180
      %p186 = scmp.eq.s32.totalorder %s21, 0
      %p187 = por %p185, %p186
      %p188 = scmp.ne.s32.totalorder %s177, %s180
      %p189 = scmp.eq.s32.totalorder %s26, 1
      %p190 = por %p188, %p189
      %p191 = scmp.ne.s32.totalorder %s180, %s181
      %p192 = scmp.eq.s32.totalorder %s26, 0
      %p193 = por %p191, %p192
      %p194 = scmp.ne.s32.totalorder %s180, %s181
      %p195 = scmp.eq.s32.totalorder %s27, 1
      %p196 = por %p194, %p195
      %p198 = scmp.ne.s32.totalorder %s181, %s197
      %p199 = scmp.eq.s32.totalorder %s27, 0
      %p200 = por %p198, %p199
      %s202 = sadd.s32 %s201, 1
      %p205 = scmp.eq.s32.totalorder %s21, 1
      %p206 = scmp.ne.s32.totalorder %s201, %s203
      %p207 = scmp.eq.s32.totalorder %s21, 0
      %p208 = por %p206, %p207
      %p209 = scmp.ne.s32.totalorder %s201, %s203
      %p210 = scmp.eq.s32.totalorder %s26, 1
      %p211 = por %p209, %p210
      %p212 = scmp.ne.s32.totalorder %s203, %s204
      %p213 = scmp.eq.s32.totalorder %s26, 0
      %p214 = por %p212, %p213
      %p215 = scmp.ne.s32.totalorder %s203, %s204
      %p216 = scmp.eq.s32.totalorder %s27, 1
      %p217 = por %p215, %p216
      %p219 = scmp.ne.s32.totalorder %s204, %s218
      %p220 = scmp.eq.s32.totalorder %s27, 0
      %p221 = por %p219, %p220
      %s222 = ssub.s32 %s21, %s28
      %p223 = scmp.eq.s32.totalorder %s222, 0
      %s225 = sadd.s32 %s224, 1
      %s226 = scalar_select %p223, %s224, %s225
      %p229 = pneg %p223
      %p230 = scmp.eq.s32.totalorder %s21, 1
      %p231 = por %p229, %p230
      %p232 = scmp.ne.s32.totalorder %s224, %s227
      %p233 = scmp.eq.s32.totalorder %s21, 0
      %p234 = por %p232, %p233
      %p235 = scmp.ne.s32.totalorder %s224, %s227
      %p236 = scmp.eq.s32.totalorder %s26, 1
      %p237 = por %p235, %p236
      %p238 = scmp.ne.s32.totalorder %s227, %s228
      %p239 = scmp.eq.s32.totalorder %s26, 0
      %p240 = por %p238, %p239
      %p241 = scmp.ne.s32.totalorder %s227, %s228
      %p242 = scmp.eq.s32.totalorder %s27, 1
      %p243 = por %p241, %p242
      %p245 = scmp.ne.s32.totalorder %s228, %s244
      %p246 = scmp.eq.s32.totalorder %s27, 0
      %p247 = por %p245, %p246
      %p248 = scmp.le.s32.totalorder 1, %s21
      %p249 = scmp.lt.s32.totalorder %s21, 3
      %p250 = pnand %p248, %p249
      %p251 = pneg %p250
      // Predicated region
      $region9: #{decoder_gru_forward.1} parent=5 // pred_check
        _
      $region10: #{decoder_gru_forward.1} parent=5 // pred_check_branch
        %253 = sbr.rel (%p250) target = $region12
      $region11: #{decoder_gru_forward.1} parent=5 // pred_region
        %s254 = ssub.s32 %s21, 1
        // Predicated region
        $region13: #{decoder_gru_forward.1} parent=11 // pred_check
          %p255 = pneg %p42
        $region14: #{decoder_gru_forward.1} parent=11 // pred_check_branch
          %257 = sbr.rel (%p255) target = $region16
        $region15: #{decoder_gru_forward.1} parent=11 // pred_region
          _
        $region16: #{decoder_gru_forward.1} parent=11 // pred_fallthru
          _
        // Predicated region
        $region17: #{decoder_gru_forward.1} parent=11 // pred_check
          %p258 = pneg %p63
        $region18: #{decoder_gru_forward.1} parent=11 // pred_check_branch
          %260 = sbr.rel (%p258) target = $region20
        $region19: #{decoder_gru_forward.1} parent=11 // pred_region
          _
        $region20: #{decoder_gru_forward.1} parent=11 // pred_fallthru
          _
      $region12: #{decoder_gru_forward.1} parent=5 // pred_fallthru
        _
      %p261 = scmp.lt.s32.totalorder %s21, 2
      // Predicated region
      $region21: #{decoder_gru_forward.1} parent=5 // pred_check
        %p262 = pneg %p261
      $region22: #{decoder_gru_forward.1} parent=5 // pred_check_branch
        %264 = sbr.rel (%p262) target = $region24
      $region23: #{decoder_gru_forward.1} parent=5 // pred_region
        // Predicated region
        $region25: #{decoder_gru_forward.1} parent=23 // pred_check
          %p265 = pneg %p83
        $region26: #{decoder_gru_forward.1} parent=23 // pred_check_branch
          %267 = sbr.rel (%p265) target = $region28
        $region27: #{decoder_gru_forward.1} parent=23 // pred_region
          %p268 = scmp.lt.s32.totalorder %s21, 1
          %s269 = scalar_select %p268, %s21, 1
          %s270 = smul.addr %s269, 8
          %s271 = scalar_lea.vmem %s2, %s270
        $region28: #{decoder_gru_forward.1} parent=23 // pred_fallthru
          _
        // Predicated region
        $region29: #{decoder_gru_forward.1} parent=23 // pred_check
          %p272 = pneg %p109
        $region30: #{decoder_gru_forward.1} parent=23 // pred_check_branch
          %274 = sbr.rel (%p272) target = $region32
        $region31: #{decoder_gru_forward.1} parent=23 // pred_region
          %s275 = sand.u32 %s99, 1
          %s276 = scalar_lea.sflag [#allocation4], %s275
          %s277 = sand.u32 %s99, 1
          %s278 = smul.addr %s277, 192
          %s279 = scalar_lea.vmem [#allocation3], %s278
          %281 = vsyncadd %s276, 0
          %s282 = smul.addr %s21, 48
          %s283 = smul.addr %s282, 4
          %s284 = scalar_lea.hbm %s3, %s283
          %s285 = sshll.u32 %s284, 4
          %s286 = int_to_ptr.hbm [resolvable:$true] %s285
          %s287 = sshll.u32 %s279, 4
          %s288 = int_to_ptr.vmem [resolvable:$true] %s287
          %293 = dma.hbm_to_vmem [thread:$0]  %s286, 3072, %s288, %s276, 192, 192, 12
        $region32: #{decoder_gru_forward.1} parent=23 // pred_fallthru
          _
        // Predicated region
        $region33: #{decoder_gru_forward.1} parent=23 // pred_check
          %p294 = pneg %p135
        $region34: #{decoder_gru_forward.1} parent=23 // pred_check_branch
          %296 = sbr.rel (%p294) target = $region36
        $region35: #{decoder_gru_forward.1} parent=23 // pred_region
          %s297 = sand.u32 %s125, 1
          %s298 = scalar_lea.sflag [#allocation6], %s297
          %s299 = sand.u32 %s125, 1
          %s300 = smul.addr %s299, 192
          %s301 = scalar_lea.vmem [#allocation5], %s300
          %303 = vsyncadd %s298, 0
          %s304 = smul.addr %s21, 48
          %s305 = smul.addr %s304, 4
          %s306 = scalar_lea.hbm %s4, %s305
          %s307 = sshll.u32 %s306, 4
          %s308 = int_to_ptr.hbm [resolvable:$true] %s307
          %s309 = sshll.u32 %s301, 4
          %s310 = int_to_ptr.vmem [resolvable:$true] %s309
          %315 = dma.hbm_to_vmem [thread:$0]  %s308, 3072, %s310, %s298, 192, 192, 12
        $region36: #{decoder_gru_forward.1} parent=23 // pred_fallthru
          _
        // Predicated region
        $region37: #{decoder_gru_forward.1} parent=23 // pred_check
          %p316 = pneg %p161
        $region38: #{decoder_gru_forward.1} parent=23 // pred_check_branch
          %318 = sbr.rel (%p316) target = $region40
        $region39: #{decoder_gru_forward.1} parent=23 // pred_region
          %p319 = scmp.lt.s32.totalorder %s21, 1
          %s320 = scalar_select %p319, %s21, 1
          %s321 = smul.addr %s320, 3
          %s322 = scalar_lea.vmem %s5, %s321
        $region40: #{decoder_gru_forward.1} parent=23 // pred_fallthru
          _
        // Predicated region
        $region41: #{decoder_gru_forward.1} parent=23 // pred_check
          %p323 = pneg %p187
        $region42: #{decoder_gru_forward.1} parent=23 // pred_check_branch
          %325 = sbr.rel (%p323) target = $region44
        $region43: #{decoder_gru_forward.1} parent=23 // pred_region
          %p326 = scmp.lt.s32.totalorder %s21, 1
          %s327 = scalar_select %p326, %s21, 1
          %s328 = scalar_lea.vmem %s6, %s327
        $region44: #{decoder_gru_forward.1} parent=23 // pred_fallthru
          _
      $region24: #{decoder_gru_forward.1} parent=5 // pred_fallthru
        _
      %p329 = scmp.le.s32.totalorder 1, %s21
      %p330 = scmp.lt.s32.totalorder %s21, 3
      %p331 = pnand %p329, %p330
      %p332 = pneg %p331
      // Predicated region
      $region45: #{decoder_gru_forward.1} parent=5 // pred_check
        _
      $region46: #{decoder_gru_forward.1} parent=5 // pred_check_branch
        %334 = sbr.rel (%p331) target = $region48
      $region47: #{decoder_gru_forward.1} parent=5 // pred_region
        %s335 = ssub.s32 %s21, 1
        %s336 = sand.u32 %s102, 1
        %s337 = scalar_lea.sflag [#allocation4], %s336
        %s338 = sand.u32 %s102, 1
        %s339 = smul.addr %s338, 192
        %s340 = scalar_lea.vmem [#allocation3], %s339
        // Predicated region
        $region49: #{decoder_gru_forward.1} parent=47 // pred_check
          %p341 = pneg %p115
        $region50: #{decoder_gru_forward.1} parent=47 // pred_check_branch
          %343 = sbr.rel (%p341) target = $region52
        $region51: #{decoder_gru_forward.1} parent=47 // pred_region
          %345 = dma.done %s337, 3072
        $region52: #{decoder_gru_forward.1} parent=47 // pred_fallthru
          _
        %s346 = sand.u32 %s128, 1
        %s347 = scalar_lea.sflag [#allocation6], %s346
        %s348 = sand.u32 %s128, 1
        %s349 = smul.addr %s348, 192
        %s350 = scalar_lea.vmem [#allocation5], %s349
        // Predicated region
        $region53: #{decoder_gru_forward.1} parent=47 // pred_check
          %p351 = pneg %p141
        $region54: #{decoder_gru_forward.1} parent=47 // pred_check_branch
          %353 = sbr.rel (%p351) target = $region56
        $region55: #{decoder_gru_forward.1} parent=47 // pred_region
          %355 = dma.done %s347, 3072
        $region56: #{decoder_gru_forward.1} parent=47 // pred_fallthru
          _
        %p356 = pneg %p42
        %p357 = pneg %p39
        %p358 = pneg %p63
        %p359 = pneg %p60
        %p360 = scmp.lt.s32.totalorder %s26, 1
        %s361 = scalar_select %p360, %s26, 1
        %s362 = smul.addr %s361, 8
        %s363 = scalar_lea.vmem %s2, %s362
        %p364 = pneg %p89
        %p365 = pneg %p86
        %s366 = sand.u32 %s102, 1
        %s367 = scalar_lea.sflag [#allocation4], %s366
        %s368 = sand.u32 %s102, 1
        %s369 = smul.addr %s368, 192
        %s370 = scalar_lea.vmem [#allocation3], %s369
        %p371 = pneg %p115
        %p372 = pneg %p112
        %s373 = sand.u32 %s128, 1
        %s374 = scalar_lea.sflag [#allocation6], %s373
        %s375 = sand.u32 %s128, 1
        %s376 = smul.addr %s375, 192
        %s377 = scalar_lea.vmem [#allocation5], %s376
        %p378 = pneg %p141
        %p379 = pneg %p138
        %p380 = scmp.lt.s32.totalorder %s26, 1
        %s381 = scalar_select %p380, %s26, 1
        %s382 = smul.addr %s381, 3
        %s383 = scalar_lea.vmem %s5, %s382
        %p384 = pneg %p167
        %p385 = pneg %p164
        %p386 = scmp.lt.s32.totalorder %s26, 1
        %s387 = scalar_select %p386, %s26, 1
        %s388 = scalar_lea.vmem %s6, %s387
        %p389 = pneg %p193
        %p390 = pneg %p190
        %p391 = pneg %p214
        %p392 = pneg %p211
        %p393 = pneg %p240
        %p394 = pneg %p237
        %p395 = scmp.lt.s32.totalorder %s26, 1
        %s396 = scalar_select %p395, %s26, 1
        %s397 = smul.addr %s396, 8
        %s398 = scalar_lea.vmem %s8, %s397
        %p399 = scmp.lt.s32.totalorder %s26, 1
        %s400 = scalar_select %p399, %s26, 1
        %s401 = smul.addr %s400, 8
        %s402 = scalar_lea.vmem %s2, %s401
        %p403 = scmp.lt.s32.totalorder %s26, 1
        %s404 = scalar_select %p403, %s26, 1
        %s405 = smul.addr %s404, 3
        %s406 = scalar_lea.vmem %s5, %s405
        %p407 = scmp.lt.s32.totalorder %s26, 1
        %s408 = scalar_select %p407, %s26, 1
        %s409 = scalar_lea.vmem %s6, %s408
        %p410 = scmp.lt.s32.totalorder %s26, 1
        %s411 = scalar_select %p410, %s26, 1
        %s412 = smul.addr %s411, 8
        %s413 = scalar_lea.vmem %s8, %s412
        %v414 = vld [vmem:[%s340] sm:$0xff]
        %v415 = vld [vmem:[%s340 + $0x8] sm:$0xf]
        %v416 = vld [vmem:[%s340 + $0xc] sm:$0xff]
        %v417 = vld [vmem:[%s340 + $0x14] sm:$0xf]
        %v418 = vld [vmem:[%s340 + $0x18] sm:$0xff]
        %v419 = vld [vmem:[%s340 + $0x20] sm:$0xf]
        %v420 = vld [vmem:[%s340 + $0x24] sm:$0xff]
        %v421 = vld [vmem:[%s340 + $0x2c] sm:$0xf]
        %v422 = vld [vmem:[%s340 + $0x30] sm:$0xff]
        %v423 = vld [vmem:[%s340 + $0x38] sm:$0xf]
        %v424 = vld [vmem:[%s340 + $0x3c] sm:$0xff]
        %v425 = vld [vmem:[%s340 + $0x44] sm:$0xf]
        %v426 = vld [vmem:[%s340 + $0x48] sm:$0xff]
        %v427 = vld [vmem:[%s340 + $0x50] sm:$0xf]
        %v428 = vld [vmem:[%s340 + $0x54] sm:$0xff]
        %v429 = vld [vmem:[%s340 + $0x5c] sm:$0xf]
        %v430 = vld [vmem:[%s340 + $0x60] sm:$0xff]
        %v431 = vld [vmem:[%s340 + $0x68] sm:$0xf]
        %v432 = vld [vmem:[%s340 + $0x6c] sm:$0xff]
        %v433 = vld [vmem:[%s340 + $0x74] sm:$0xf]
        %v434 = vld [vmem:[%s340 + $0x78] sm:$0xff]
        %v435 = vld [vmem:[%s340 + $0x80] sm:$0xf]
        %v436 = vld [vmem:[%s340 + $0x84] sm:$0xff]
        %v437 = vld [vmem:[%s340 + $0x8c] sm:$0xf]
        %v438 = vld [vmem:[%s340 + $0x90] sm:$0xff]
        %v439 = vld [vmem:[%s340 + $0x98] sm:$0xf]
        %v440 = vld [vmem:[%s340 + $0x9c] sm:$0xff]
        %v441 = vld [vmem:[%s340 + $0xa4] sm:$0xf]
        %v442 = vld [vmem:[%s340 + $0xa8] sm:$0xff]
        %v443 = vld [vmem:[%s340 + $0xb0] sm:$0xf]
        %v444 = vld [vmem:[%s340 + $0xb4] sm:$0xff]
        %v445 = vld [vmem:[%s340 + $0xbc] sm:$0xf]
        %v446 = vld [vmem:[%s350] sm:$0xff]
        %v447 = vld [vmem:[%s350 + $0x8] sm:$0xf]
        %v448 = vld [vmem:[%s350 + $0xc] sm:$0xff]
        %v449 = vld [vmem:[%s350 + $0x14] sm:$0xf]
        %v450 = vld [vmem:[%s350 + $0x18] sm:$0xff]
        %v451 = vld [vmem:[%s350 + $0x20] sm:$0xf]
        %v452 = vld [vmem:[%s350 + $0x24] sm:$0xff]
        %v453 = vld [vmem:[%s350 + $0x2c] sm:$0xf]
        %v454 = vld [vmem:[%s350 + $0x30] sm:$0xff]
        %v455 = vld [vmem:[%s350 + $0x38] sm:$0xf]
        %v456 = vld [vmem:[%s350 + $0x3c] sm:$0xff]
        %v457 = vld [vmem:[%s350 + $0x44] sm:$0xf]
        %v458 = vld [vmem:[%s350 + $0x48] sm:$0xff]
        %v459 = vld [vmem:[%s350 + $0x50] sm:$0xf]
        %v460 = vld [vmem:[%s350 + $0x54] sm:$0xff]
        %v461 = vld [vmem:[%s350 + $0x5c] sm:$0xf]
        %v462 = vld [vmem:[%s350 + $0x60] sm:$0xff]
        %v463 = vld [vmem:[%s350 + $0x68] sm:$0xf]
        %v464 = vld [vmem:[%s350 + $0x6c] sm:$0xff]
        %v465 = vld [vmem:[%s350 + $0x74] sm:$0xf]
        %v466 = vld [vmem:[%s350 + $0x78] sm:$0xff]
        %v467 = vld [vmem:[%s350 + $0x80] sm:$0xf]
        %v468 = vld [vmem:[%s350 + $0x84] sm:$0xff]
        %v469 = vld [vmem:[%s350 + $0x8c] sm:$0xf]
        %v470 = vld [vmem:[%s350 + $0x90] sm:$0xff]
        %v471 = vld [vmem:[%s350 + $0x98] sm:$0xf]
        %v472 = vld [vmem:[%s350 + $0x9c] sm:$0xff]
        %v473 = vld [vmem:[%s350 + $0xa4] sm:$0xf]
        %v474 = vld [vmem:[%s350 + $0xa8] sm:$0xff]
        %v475 = vld [vmem:[%s350 + $0xb0] sm:$0xf]
        %v476 = vld [vmem:[%s350 + $0xb4] sm:$0xff]
        %v477 = vld [vmem:[%s350 + $0xbc] sm:$0xf]
        %v478 = vld [vmem:[%s406] sm:$0x7]
        %v479 = vld [vmem:[%s409] sm:$0x1]
        %v480 = vld [vmem:[%s402] sm:$0xff]
        %v481 = vld [vmem:[%s1] sm:$0xff]
        %p482 = scmp.eq.s32.totalorder %s26, 0
        // Predicated region
        $region57: #{decoder_gru_forward.1} parent=47 // pred_check
          %p483 = pneg %p482
        $region58: #{decoder_gru_forward.1} parent=47 // pred_check_branch
          %485 = sbr.rel (%p483) target = $region60
        $region59: #{decoder_gru_forward.1} parent=47 // pred_region
          %v486 = vld [vmem:[%s0] sm:$0xf]
          %v487 = vld [vmem:[%s0 + $0x4] sm:$0xf]
          %v488 = vld [vmem:[%s0 + $0x8] sm:$0xf]
          %v489 = vld [vmem:[%s0 + $0xc] sm:$0xf]
          %v490 = vld [vmem:[%s0 + $0x10] sm:$0xf]
          %v491 = vld [vmem:[%s0 + $0x14] sm:$0xf]
          %v492 = vld [vmem:[%s0 + $0x18] sm:$0xf]
          %v493 = vld [vmem:[%s0 + $0x1c] sm:$0xf]
          %v495 = vperm.slane %v478, 0
          %v496 = vperm.slane %v478, 1
          %v497 = vperm.slane %v478, 2
          %v509 = vunpack.c.l.b16 %v486
          %v510 = vunpack.c.l.b16 %v487
          %v511 = vunpack.c.l.b16 %v488
          %v512 = vunpack.c.l.b16 %v489
          %v513 = vunpack.c.l.b16 %v490
          %v514 = vunpack.c.l.b16 %v491
          %v515 = vunpack.c.l.b16 %v492
          %v516 = vunpack.c.l.b16 %v493
          %v517 = vpack.c.b16 %v510, %v509
          %v518 = vpack.c.b16 %v512, %v511
          %v519 = vpack.c.b16 %v514, %v513
          %v520 = vpack.c.b16 %v516, %v515
          %v557 = vunpack.c.l.b16 %v414
          %v558 = vunpack.c.h.b16 %v414
          %v559 = vunpack.c.l.b16 %v415
          %v560 = vunpack.c.l.b16 %v416
          %v561 = vunpack.c.h.b16 %v416
          %v562 = vunpack.c.l.b16 %v417
          %v563 = vunpack.c.l.b16 %v418
          %v564 = vunpack.c.h.b16 %v418
          %v565 = vunpack.c.l.b16 %v419
          %v566 = vunpack.c.l.b16 %v420
          %v567 = vunpack.c.h.b16 %v420
          %v568 = vunpack.c.l.b16 %v421
          %v569 = vunpack.c.l.b16 %v422
          %v570 = vunpack.c.h.b16 %v422
          %v571 = vunpack.c.l.b16 %v423
          %v572 = vunpack.c.l.b16 %v424
          %v573 = vunpack.c.h.b16 %v424
          %v574 = vunpack.c.l.b16 %v425
          %v575 = vunpack.c.l.b16 %v426
          %v576 = vunpack.c.h.b16 %v426
          %v577 = vunpack.c.l.b16 %v427
          %v578 = vunpack.c.l.b16 %v428
          %v579 = vunpack.c.h.b16 %v428
          %v580 = vunpack.c.l.b16 %v429
          %v581 = vunpack.c.l.b16 %v430
          %v582 = vunpack.c.h.b16 %v430
          %v583 = vunpack.c.l.b16 %v431
          %v584 = vunpack.c.l.b16 %v432
          %v585 = vunpack.c.h.b16 %v432
          %v586 = vunpack.c.l.b16 %v433
          %v587 = vunpack.c.l.b16 %v434
          %v588 = vunpack.c.h.b16 %v434
          %v589 = vunpack.c.l.b16 %v435
          %v590 = vunpack.c.l.b16 %v436
          %v591 = vunpack.c.h.b16 %v436
          %v592 = vunpack.c.l.b16 %v437
          %v593 = vunpack.c.l.b16 %v438
          %v594 = vunpack.c.h.b16 %v438
          %v595 = vunpack.c.l.b16 %v439
          %v596 = vunpack.c.l.b16 %v440
          %v597 = vunpack.c.h.b16 %v440
          %v598 = vunpack.c.l.b16 %v441
          %v599 = vunpack.c.l.b16 %v442
          %v600 = vunpack.c.h.b16 %v442
          %v601 = vunpack.c.l.b16 %v443
          %v602 = vunpack.c.l.b16 %v444
          %v603 = vunpack.c.h.b16 %v444
          %v604 = vunpack.c.l.b16 %v445
          %v605 = vpack.c.b16 %v560, %v557
          %v606 = vpack.c.b16 %v561, %v558
          %v607 = vpack.c.b16 %v562, %v559
          %v608 = vpack.c.b16 %v566, %v563
          %v609 = vpack.c.b16 %v567, %v564
          %v610 = vpack.c.b16 %v568, %v565
          %v611 = vpack.c.b16 %v572, %v569
          %v612 = vpack.c.b16 %v573, %v570
          %v613 = vpack.c.b16 %v574, %v571
          %v614 = vpack.c.b16 %v578, %v575
          %v615 = vpack.c.b16 %v579, %v576
          %v616 = vpack.c.b16 %v580, %v577
          %v617 = vpack.c.b16 %v584, %v581
          %v618 = vpack.c.b16 %v585, %v582
          %v619 = vpack.c.b16 %v586, %v583
          %v620 = vpack.c.b16 %v590, %v587
          %v621 = vpack.c.b16 %v591, %v588
          %v622 = vpack.c.b16 %v592, %v589
          %v623 = vpack.c.b16 %v596, %v593
          %v624 = vpack.c.b16 %v597, %v594
          %v625 = vpack.c.b16 %v598, %v595
          %v626 = vpack.c.b16 %v602, %v599
          %v627 = vpack.c.b16 %v603, %v600
          %v628 = vpack.c.b16 %v604, %v601
          %653 = vmatpush.bf16.msra.mxu0 %v626
          %654 = vmatpush.bf16.msra.mxu0 %v623
          %655 = vmatpush.bf16.msra.mxu0 %v620
          %656 = vmatpush.bf16.msra.mxu0 %v617
          %657 = vmatpush.bf16.msra.mxu0 %v614
          %658 = vmatpush.bf16.msra.mxu0 %v611
          %659 = vmatpush.bf16.msra.mxu0 %v608
          %660 = vmatpush.bf16.msra.mxu0 %v605
          %661 = vmatmul.bf16.gmra.mxu0 %v517
          %v662 = vpop.f32.mrf.mxu0
          %v663 = vadd.f32 %v495, %v662
          %v664 = vpop.f32.mrf.mxu0
          %v665 = vadd.f32 %v495, %v664
          %666 = vmatmul.bf16.gmra.mxu0 %v518
          %v667 = vpop.f32.mrf.mxu0
          %v668 = vadd.f32 %v495, %v667
          %v669 = vpop.f32.mrf.mxu0
          %v670 = vadd.f32 %v495, %v669
          %671 = vmatmul.bf16.gmra.mxu0 %v519
          %v672 = vpop.f32.mrf.mxu0
          %v673 = vadd.f32 %v495, %v672
          %v674 = vpop.f32.mrf.mxu0
          %v675 = vadd.f32 %v495, %v674
          %676 = vmatmul.bf16.gmra.mxu0 %v520
          %v677 = vpop.f32.mrf.mxu0
          %v678 = vadd.f32 %v495, %v677
          %v679 = vpop.f32.mrf.mxu0
          %v680 = vadd.f32 %v495, %v679
          %681 = vdwg.mxu0
          %682 = vmatpush.bf16.msra.mxu0 %v627
          %683 = vmatpush.bf16.msra.mxu0 %v624
          %684 = vmatpush.bf16.msra.mxu0 %v621
          %685 = vmatpush.bf16.msra.mxu0 %v618
          %686 = vmatpush.bf16.msra.mxu0 %v615
          %687 = vmatpush.bf16.msra.mxu0 %v612
          %688 = vmatpush.bf16.msra.mxu0 %v609
          %689 = vmatpush.bf16.msra.mxu0 %v606
          %690 = vmatmul.bf16.gmra.mxu0 %v517
          %v691 = vpop.f32.mrf.mxu0
          %v692 = vadd.f32 %v496, %v691
          %v693 = vpop.f32.mrf.mxu0
          %v694 = vadd.f32 %v496, %v693
          %695 = vmatmul.bf16.gmra.mxu0 %v518
          %v696 = vpop.f32.mrf.mxu0
          %v697 = vadd.f32 %v496, %v696
          %v698 = vpop.f32.mrf.mxu0
          %v699 = vadd.f32 %v496, %v698
          %700 = vmatmul.bf16.gmra.mxu0 %v519
          %v701 = vpop.f32.mrf.mxu0
          %v702 = vadd.f32 %v496, %v701
          %v703 = vpop.f32.mrf.mxu0
          %v704 = vadd.f32 %v496, %v703
          %705 = vmatmul.bf16.gmra.mxu0 %v520
          %v706 = vpop.f32.mrf.mxu0
          %v707 = vadd.f32 %v496, %v706
          %v708 = vpop.f32.mrf.mxu0
          %v709 = vadd.f32 %v496, %v708
          %710 = vdwg.mxu0
          %711 = vmatpush.bf16.msra.mxu0 %v628
          %712 = vmatpush.bf16.msra.mxu0 %v625
          %713 = vmatpush.bf16.msra.mxu0 %v622
          %714 = vmatpush.bf16.msra.mxu0 %v619
          %715 = vmatpush.bf16.msra.mxu0 %v616
          %716 = vmatpush.bf16.msra.mxu0 %v613
          %717 = vmatpush.bf16.msra.mxu0 %v610
          %718 = vmatpush.bf16.msra.mxu0 %v607
          %719 = vmatmul.bf16.gmra.mxu0 %v517
          %v720 = vpop.f32.mrf.mxu0
          %v721 = vadd.f32 %v497, %v720
          %v722 = vpop.f32.mrf.mxu0
          %v723 = vadd.f32 %v497, %v722
          %724 = vmatmul.bf16.gmra.mxu0 %v518
          %v725 = vpop.f32.mrf.mxu0
          %v726 = vadd.f32 %v497, %v725
          %v727 = vpop.f32.mrf.mxu0
          %v728 = vadd.f32 %v497, %v727
          %729 = vmatmul.bf16.gmra.mxu0 %v519
          %v730 = vpop.f32.mrf.mxu0
          %v731 = vadd.f32 %v497, %v730
          %v732 = vpop.f32.mrf.mxu0
          %v733 = vadd.f32 %v497, %v732
          %734 = vmatmul.bf16.gmra.mxu0 %v520
          %v735 = vpop.f32.mrf.mxu0
          %v736 = vadd.f32 %v497, %v735
          %v737 = vpop.f32.mrf.mxu0
          %v738 = vadd.f32 %v497, %v737
          %739 = vdwg.mxu0
          %740 = vst [vmem:[#allocation2] sm:$0xff] %v663
          %741 = vst [vmem:[#allocation2 + $0x8] sm:$0xff] %v692
          %742 = vst [vmem:[#allocation2 + $0x10] sm:$0xff] %v721
          %743 = vst [vmem:[#allocation2 + $0x18] sm:$0xff] %v665
          %744 = vst [vmem:[#allocation2 + $0x20] sm:$0xff] %v694
          %745 = vst [vmem:[#allocation2 + $0x28] sm:$0xff] %v723
          %746 = vst [vmem:[#allocation2 + $0x30] sm:$0xff] %v668
          %747 = vst [vmem:[#allocation2 + $0x38] sm:$0xff] %v697
          %748 = vst [vmem:[#allocation2 + $0x40] sm:$0xff] %v726
          %749 = vst [vmem:[#allocation2 + $0x48] sm:$0xff] %v670
          %750 = vst [vmem:[#allocation2 + $0x50] sm:$0xff] %v699
          %751 = vst [vmem:[#allocation2 + $0x58] sm:$0xff] %v728
          %752 = vst [vmem:[#allocation2 + $0x60] sm:$0xff] %v673
          %753 = vst [vmem:[#allocation2 + $0x68] sm:$0xff] %v702
          %754 = vst [vmem:[#allocation2 + $0x70] sm:$0xff] %v731
          %755 = vst [vmem:[#allocation2 + $0x78] sm:$0xff] %v675
          %756 = vst [vmem:[#allocation2 + $0x80] sm:$0xff] %v704
          %757 = vst [vmem:[#allocation2 + $0x88] sm:$0xff] %v733
          %758 = vst [vmem:[#allocation2 + $0x90] sm:$0xff] %v678
          %759 = vst [vmem:[#allocation2 + $0x98] sm:$0xff] %v707
          %760 = vst [vmem:[#allocation2 + $0xa0] sm:$0xff] %v736
          %761 = vst [vmem:[#allocation2 + $0xa8] sm:$0xff] %v680
          %762 = vst [vmem:[#allocation2 + $0xb0] sm:$0xff] %v709
          %763 = vst [vmem:[#allocation2 + $0xb8] sm:$0xff] %v738
        $region60: #{decoder_gru_forward.1} parent=47 // pred_fallthru
          _
        %p764 = scmp.gt.s32.totalorder %s26, 0
        // Predicated region
        $region61: #{decoder_gru_forward.1} parent=47 // pred_check
          %p765 = pneg %p764
        $region62: #{decoder_gru_forward.1} parent=47 // pred_check_branch
          %767 = sbr.rel (%p765) target = $region64
        $region63: #{decoder_gru_forward.1} parent=47 // pred_region
          %v768 = vld [vmem:[%s7] sm:$0xff]
          %v769 = vld [vmem:[%s7 + $0x8] sm:$0xff]
          %v770 = vld [vmem:[%s7 + $0x10] sm:$0xff]
          %v771 = vld [vmem:[%s7 + $0x18] sm:$0xff]
          %v772 = vld [vmem:[%s7 + $0x20] sm:$0xff]
          %v773 = vld [vmem:[%s7 + $0x28] sm:$0xff]
          %v774 = vld [vmem:[%s7 + $0x30] sm:$0xff]
          %v775 = vld [vmem:[%s7 + $0x38] sm:$0xff]
          %v776 = vpack.c.bf16 %v769, %v768
          %v777 = vpack.c.bf16 %v771, %v770
          %v778 = vpack.c.bf16 %v773, %v772
          %v779 = vpack.c.bf16 %v775, %v774
          %v781 = vperm.slane %v478, 0
          %v782 = vperm.slane %v478, 1
          %v783 = vperm.slane %v478, 2
          %v819 = vunpack.c.l.b16 %v414
          %v820 = vunpack.c.h.b16 %v414
          %v821 = vunpack.c.l.b16 %v415
          %v822 = vunpack.c.l.b16 %v416
          %v823 = vunpack.c.h.b16 %v416
          %v824 = vunpack.c.l.b16 %v417
          %v825 = vunpack.c.l.b16 %v418
          %v826 = vunpack.c.h.b16 %v418
          %v827 = vunpack.c.l.b16 %v419
          %v828 = vunpack.c.l.b16 %v420
          %v829 = vunpack.c.h.b16 %v420
          %v830 = vunpack.c.l.b16 %v421
          %v831 = vunpack.c.l.b16 %v422
          %v832 = vunpack.c.h.b16 %v422
          %v833 = vunpack.c.l.b16 %v423
          %v834 = vunpack.c.l.b16 %v424
          %v835 = vunpack.c.h.b16 %v424
          %v836 = vunpack.c.l.b16 %v425
          %v837 = vunpack.c.l.b16 %v426
          %v838 = vunpack.c.h.b16 %v426
          %v839 = vunpack.c.l.b16 %v427
          %v840 = vunpack.c.l.b16 %v428
          %v841 = vunpack.c.h.b16 %v428
          %v842 = vunpack.c.l.b16 %v429
          %v843 = vunpack.c.l.b16 %v430
          %v844 = vunpack.c.h.b16 %v430
          %v845 = vunpack.c.l.b16 %v431
          %v846 = vunpack.c.l.b16 %v432
          %v847 = vunpack.c.h.b16 %v432
          %v848 = vunpack.c.l.b16 %v433
          %v849 = vunpack.c.l.b16 %v434
          %v850 = vunpack.c.h.b16 %v434
          %v851 = vunpack.c.l.b16 %v435
          %v852 = vunpack.c.l.b16 %v436
          %v853 = vunpack.c.h.b16 %v436
          %v854 = vunpack.c.l.b16 %v437
          %v855 = vunpack.c.l.b16 %v438
          %v856 = vunpack.c.h.b16 %v438
          %v857 = vunpack.c.l.b16 %v439
          %v858 = vunpack.c.l.b16 %v440
          %v859 = vunpack.c.h.b16 %v440
          %v860 = vunpack.c.l.b16 %v441
          %v861 = vunpack.c.l.b16 %v442
          %v862 = vunpack.c.h.b16 %v442
          %v863 = vunpack.c.l.b16 %v443
          %v864 = vunpack.c.l.b16 %v444
          %v865 = vunpack.c.h.b16 %v444
          %v866 = vunpack.c.l.b16 %v445
          %v867 = vpack.c.b16 %v822, %v819
          %v868 = vpack.c.b16 %v823, %v820
          %v869 = vpack.c.b16 %v824, %v821
          %v870 = vpack.c.b16 %v828, %v825
          %v871 = vpack.c.b16 %v829, %v826
          %v872 = vpack.c.b16 %v830, %v827
          %v873 = vpack.c.b16 %v834, %v831
          %v874 = vpack.c.b16 %v835, %v832
          %v875 = vpack.c.b16 %v836, %v833
          %v876 = vpack.c.b16 %v840, %v837
          %v877 = vpack.c.b16 %v841, %v838
          %v878 = vpack.c.b16 %v842, %v839
          %v879 = vpack.c.b16 %v846, %v843
          %v880 = vpack.c.b16 %v847, %v844
          %v881 = vpack.c.b16 %v848, %v845
          %v882 = vpack.c.b16 %v852, %v849
          %v883 = vpack.c.b16 %v853, %v850
          %v884 = vpack.c.b16 %v854, %v851
          %v885 = vpack.c.b16 %v858, %v855
          %v886 = vpack.c.b16 %v859, %v856
          %v887 = vpack.c.b16 %v860, %v857
          %v888 = vpack.c.b16 %v864, %v861
          %v889 = vpack.c.b16 %v865, %v862
          %v890 = vpack.c.b16 %v866, %v863
          %915 = vmatpush.bf16.msra.mxu0 %v888
          %916 = vmatpush.bf16.msra.mxu0 %v885
          %917 = vmatpush.bf16.msra.mxu0 %v882
          %918 = vmatpush.bf16.msra.mxu0 %v879
          %919 = vmatpush.bf16.msra.mxu0 %v876
          %920 = vmatpush.bf16.msra.mxu0 %v873
          %921 = vmatpush.bf16.msra.mxu0 %v870
          %922 = vmatpush.bf16.msra.mxu0 %v867
          %923 = vmatmul.bf16.gmra.mxu0 %v776
          %v924 = vpop.f32.mrf.mxu0
          %v925 = vadd.f32 %v781, %v924
          %v926 = vpop.f32.mrf.mxu0
          %v927 = vadd.f32 %v781, %v926
          %928 = vmatmul.bf16.gmra.mxu0 %v777
          %v929 = vpop.f32.mrf.mxu0
          %v930 = vadd.f32 %v781, %v929
          %v931 = vpop.f32.mrf.mxu0
          %v932 = vadd.f32 %v781, %v931
          %933 = vmatmul.bf16.gmra.mxu0 %v778
          %v934 = vpop.f32.mrf.mxu0
          %v935 = vadd.f32 %v781, %v934
          %v936 = vpop.f32.mrf.mxu0
          %v937 = vadd.f32 %v781, %v936
          %938 = vmatmul.bf16.gmra.mxu0 %v779
          %v939 = vpop.f32.mrf.mxu0
          %v940 = vadd.f32 %v781, %v939
          %v941 = vpop.f32.mrf.mxu0
          %v942 = vadd.f32 %v781, %v941
          %943 = vdwg.mxu0
          %944 = vmatpush.bf16.msra.mxu0 %v889
          %945 = vmatpush.bf16.msra.mxu0 %v886
          %946 = vmatpush.bf16.msra.mxu0 %v883
          %947 = vmatpush.bf16.msra.mxu0 %v880
          %948 = vmatpush.bf16.msra.mxu0 %v877
          %949 = vmatpush.bf16.msra.mxu0 %v874
          %950 = vmatpush.bf16.msra.mxu0 %v871
          %951 = vmatpush.bf16.msra.mxu0 %v868
          %952 = vmatmul.bf16.gmra.mxu0 %v776
          %v953 = vpop.f32.mrf.mxu0
          %v954 = vadd.f32 %v782, %v953
          %v955 = vpop.f32.mrf.mxu0
          %v956 = vadd.f32 %v782, %v955
          %957 = vmatmul.bf16.gmra.mxu0 %v777
          %v958 = vpop.f32.mrf.mxu0
          %v959 = vadd.f32 %v782, %v958
          %v960 = vpop.f32.mrf.mxu0
          %v961 = vadd.f32 %v782, %v960
          %962 = vmatmul.bf16.gmra.mxu0 %v778
          %v963 = vpop.f32.mrf.mxu0
          %v964 = vadd.f32 %v782, %v963
          %v965 = vpop.f32.mrf.mxu0
          %v966 = vadd.f32 %v782, %v965
          %967 = vmatmul.bf16.gmra.mxu0 %v779
          %v968 = vpop.f32.mrf.mxu0
          %v969 = vadd.f32 %v782, %v968
          %v970 = vpop.f32.mrf.mxu0
          %v971 = vadd.f32 %v782, %v970
          %972 = vdwg.mxu0
          %973 = vmatpush.bf16.msra.mxu0 %v890
          %974 = vmatpush.bf16.msra.mxu0 %v887
          %975 = vmatpush.bf16.msra.mxu0 %v884
          %976 = vmatpush.bf16.msra.mxu0 %v881
          %977 = vmatpush.bf16.msra.mxu0 %v878
          %978 = vmatpush.bf16.msra.mxu0 %v875
          %979 = vmatpush.bf16.msra.mxu0 %v872
          %980 = vmatpush.bf16.msra.mxu0 %v869
          %981 = vmatmul.bf16.gmra.mxu0 %v776
          %v982 = vpop.f32.mrf.mxu0
          %v983 = vadd.f32 %v783, %v982
          %v984 = vpop.f32.mrf.mxu0
          %v985 = vadd.f32 %v783, %v984
          %986 = vmatmul.bf16.gmra.mxu0 %v777
          %v987 = vpop.f32.mrf.mxu0
          %v988 = vadd.f32 %v783, %v987
          %v989 = vpop.f32.mrf.mxu0
          %v990 = vadd.f32 %v783, %v989
          %991 = vmatmul.bf16.gmra.mxu0 %v778
          %v992 = vpop.f32.mrf.mxu0
          %v993 = vadd.f32 %v783, %v992
          %v994 = vpop.f32.mrf.mxu0
          %v995 = vadd.f32 %v783, %v994
          %996 = vmatmul.bf16.gmra.mxu0 %v779
          %v997 = vpop.f32.mrf.mxu0
          %v998 = vadd.f32 %v783, %v997
          %v999 = vpop.f32.mrf.mxu0
          %v1000 = vadd.f32 %v783, %v999
          %1001 = vdwg.mxu0
          %1002 = vst [vmem:[#allocation2] sm:$0xff] %v925
          %1003 = vst [vmem:[#allocation2 + $0x8] sm:$0xff] %v954
          %1004 = vst [vmem:[#allocation2 + $0x10] sm:$0xff] %v983
          %1005 = vst [vmem:[#allocation2 + $0x18] sm:$0xff] %v927
          %1006 = vst [vmem:[#allocation2 + $0x20] sm:$0xff] %v956
          %1007 = vst [vmem:[#allocation2 + $0x28] sm:$0xff] %v985
          %1008 = vst [vmem:[#allocation2 + $0x30] sm:$0xff] %v930
          %1009 = vst [vmem:[#allocation2 + $0x38] sm:$0xff] %v959
          %1010 = vst [vmem:[#allocation2 + $0x40] sm:$0xff] %v988
          %1011 = vst [vmem:[#allocation2 + $0x48] sm:$0xff] %v932
          %1012 = vst [vmem:[#allocation2 + $0x50] sm:$0xff] %v961
          %1013 = vst [vmem:[#allocation2 + $0x58] sm:$0xff] %v990
          %1014 = vst [vmem:[#allocation2 + $0x60] sm:$0xff] %v935
          %1015 = vst [vmem:[#allocation2 + $0x68] sm:$0xff] %v964
          %1016 = vst [vmem:[#allocation2 + $0x70] sm:$0xff] %v993
          %1017 = vst [vmem:[#allocation2 + $0x78] sm:$0xff] %v937
          %1018 = vst [vmem:[#allocation2 + $0x80] sm:$0xff] %v966
          %1019 = vst [vmem:[#allocation2 + $0x88] sm:$0xff] %v995
          %1020 = vst [vmem:[#allocation2 + $0x90] sm:$0xff] %v940
          %1021 = vst [vmem:[#allocation2 + $0x98] sm:$0xff] %v969
          %1022 = vst [vmem:[#allocation2 + $0xa0] sm:$0xff] %v998
          %1023 = vst [vmem:[#allocation2 + $0xa8] sm:$0xff] %v942
          %1024 = vst [vmem:[#allocation2 + $0xb0] sm:$0xff] %v971
          %1025 = vst [vmem:[#allocation2 + $0xb8] sm:$0xff] %v1000
        $region64: #{decoder_gru_forward.1} parent=47 // pred_fallthru
          _
        %v1026 = vld [vmem:[#allocation2] sm:$0xff]
        %v1027 = vld [vmem:[#allocation2 + $0x8] sm:$0xff]
        %v1028 = vld [vmem:[#allocation2 + $0x10] sm:$0xff]
        %v1029 = vpack.c.bf16 %v480, %v480
        %v1062 = vunpack.c.l.b16 %v446
        %v1063 = vunpack.c.h.b16 %v446
        %v1064 = vunpack.c.l.b16 %v447
        %v1065 = vunpack.c.l.b16 %v448
        %v1066 = vunpack.c.h.b16 %v448
        %v1067 = vunpack.c.l.b16 %v449
        %v1068 = vunpack.c.l.b16 %v450
        %v1069 = vunpack.c.h.b16 %v450
        %v1070 = vunpack.c.l.b16 %v451
        %v1071 = vunpack.c.l.b16 %v452
        %v1072 = vunpack.c.h.b16 %v452
        %v1073 = vunpack.c.l.b16 %v453
        %v1074 = vunpack.c.l.b16 %v454
        %v1075 = vunpack.c.h.b16 %v454
        %v1076 = vunpack.c.l.b16 %v455
        %v1077 = vunpack.c.l.b16 %v456
        %v1078 = vunpack.c.h.b16 %v456
        %v1079 = vunpack.c.l.b16 %v457
        %v1080 = vunpack.c.l.b16 %v458
        %v1081 = vunpack.c.h.b16 %v458
        %v1082 = vunpack.c.l.b16 %v459
        %v1083 = vunpack.c.l.b16 %v460
        %v1084 = vunpack.c.h.b16 %v460
        %v1085 = vunpack.c.l.b16 %v461
        %v1086 = vunpack.c.l.b16 %v462
        %v1087 = vunpack.c.h.b16 %v462
        %v1088 = vunpack.c.l.b16 %v463
        %v1089 = vunpack.c.l.b16 %v464
        %v1090 = vunpack.c.h.b16 %v464
        %v1091 = vunpack.c.l.b16 %v465
        %v1092 = vunpack.c.l.b16 %v466
        %v1093 = vunpack.c.h.b16 %v466
        %v1094 = vunpack.c.l.b16 %v467
        %v1095 = vunpack.c.l.b16 %v468
        %v1096 = vunpack.c.h.b16 %v468
        %v1097 = vunpack.c.l.b16 %v469
        %v1098 = vunpack.c.l.b16 %v470
        %v1099 = vunpack.c.h.b16 %v470
        %v1100 = vunpack.c.l.b16 %v471
        %v1101 = vunpack.c.l.b16 %v472
        %v1102 = vunpack.c.h.b16 %v472
        %v1103 = vunpack.c.l.b16 %v473
        %v1104 = vunpack.c.l.b16 %v474
        %v1105 = vunpack.c.h.b16 %v474
        %v1106 = vunpack.c.l.b16 %v475
        %v1107 = vunpack.c.l.b16 %v476
        %v1108 = vunpack.c.h.b16 %v476
        %v1109 = vunpack.c.l.b16 %v477
        %v1110 = vpack.c.b16 %v1065, %v1062
        %v1111 = vpack.c.b16 %v1066, %v1063
        %v1112 = vpack.c.b16 %v1067, %v1064
        %v1113 = vpack.c.b16 %v1071, %v1068
        %v1114 = vpack.c.b16 %v1072, %v1069
        %v1115 = vpack.c.b16 %v1073, %v1070
        %v1116 = vpack.c.b16 %v1077, %v1074
        %v1117 = vpack.c.b16 %v1078, %v1075
        %v1118 = vpack.c.b16 %v1079, %v1076
        %v1119 = vpack.c.b16 %v1083, %v1080
        %v1120 = vpack.c.b16 %v1084, %v1081
        %v1121 = vpack.c.b16 %v1085, %v1082
        %v1122 = vpack.c.b16 %v1089, %v1086
        %v1123 = vpack.c.b16 %v1090, %v1087
        %v1124 = vpack.c.b16 %v1091, %v1088
        %v1125 = vpack.c.b16 %v1095, %v1092
        %v1126 = vpack.c.b16 %v1096, %v1093
        %v1127 = vpack.c.b16 %v1097, %v1094
        %v1128 = vpack.c.b16 %v1101, %v1098
        %v1129 = vpack.c.b16 %v1102, %v1099
        %v1130 = vpack.c.b16 %v1103, %v1100
        %v1131 = vpack.c.b16 %v1107, %v1104
        %v1132 = vpack.c.b16 %v1108, %v1105
        %v1133 = vpack.c.b16 %v1109, %v1106
        %1158 = vmatpush.bf16.msra.mxu0 %v1131
        %1159 = vmatpush.bf16.msra.mxu0 %v1128
        %1160 = vmatpush.bf16.msra.mxu0 %v1125
        %1161 = vmatpush.bf16.msra.mxu0 %v1122
        %1162 = vmatpush.bf16.msra.mxu0 %v1119
        %1163 = vmatpush.bf16.msra.mxu0 %v1116
        %1164 = vmatpush.bf16.msra.mxu0 %v1113
        %1165 = vmatpush.bf16.msra.mxu0 %v1110
        %1166 = vmatmul.bf16.gmra.mxu0 %v1029
        %v1167 = vpop.f32.mrf.mxu0
        %v1168 = vadd.f32 0.0, %v1167
        %v1169 = vpop.f32.mrf.mxu0
        %1170 = vdwg.mxu0
        %1171 = vmatpush.bf16.msra.mxu0 %v1132
        %1172 = vmatpush.bf16.msra.mxu0 %v1129
        %1173 = vmatpush.bf16.msra.mxu0 %v1126
        %1174 = vmatpush.bf16.msra.mxu0 %v1123
        %1175 = vmatpush.bf16.msra.mxu0 %v1120
        %1176 = vmatpush.bf16.msra.mxu0 %v1117
        %1177 = vmatpush.bf16.msra.mxu0 %v1114
        %1178 = vmatpush.bf16.msra.mxu0 %v1111
        %1179 = vmatmul.bf16.gmra.mxu0 %v1029
        %v1180 = vpop.f32.mrf.mxu0
        %v1181 = vadd.f32 0.0, %v1180
        %v1182 = vpop.f32.mrf.mxu0
        %1183 = vdwg.mxu0
        %1184 = vmatpush.bf16.msra.mxu0 %v1133
        %1185 = vmatpush.bf16.msra.mxu0 %v1130
        %1186 = vmatpush.bf16.msra.mxu0 %v1127
        %1187 = vmatpush.bf16.msra.mxu0 %v1124
        %1188 = vmatpush.bf16.msra.mxu0 %v1121
        %1189 = vmatpush.bf16.msra.mxu0 %v1118
        %1190 = vmatpush.bf16.msra.mxu0 %v1115
        %1191 = vmatpush.bf16.msra.mxu0 %v1112
        %1192 = vmatmul.bf16.gmra.mxu0 %v1029
        %v1193 = vpop.f32.mrf.mxu0
        %v1194 = vadd.f32 0.0, %v1193
        %v1195 = vpop.f32.mrf.mxu0
        %1196 = vdwg.mxu0
        %v1197 = vadd.f32 %v1026, %v1168
        %v1198 = vxor.u32 %v1197, 2147483648
        %v1199 = vmul.f32 %v1198, 1.442695
        %v1200 = vpow.pop %v1199
        %v1201 = vadd.f32 %v1200, 1.0
        %v1202 = vrcp.pop %v1201
        %v1203 = vmul.f32 %v1201, %v1202
        %v1204 = vsub.f32 1.0, %v1203
        %v1205 = vmul.f32 %v1202, %v1204
        %v1206 = vadd.f32 %v1202, %v1205
        %vm1207 = vweird.f32 %v1201
        %vm1208 = vweird.f32 %v1202
        %vm1209 = vmor %vm1207, %vm1208
        %v1210 = vsel %vm1209, %v1202, %v1206
        %v1211 = vand.u32 2147483647, %v1201
        %vm1212 = vcmp.eq.f32.partialorder %v1211, 8.507059e+37
        %v1213 = vand.u32 %v1201, 2147483648
        %v1214 = vor.u32 1.1754944e-38, %v1213
        %v1215 = vsel %vm1212, %v1214, %v1210
        %v1216 = vmul.f32 1.0, %v1215
        %v1217 = vadd.f32 %v1027, %v1181
        %v1218 = vxor.u32 %v1217, 2147483648
        %v1219 = vmul.f32 %v1218, 1.442695
        %v1220 = vpow.pop %v1219
        %v1221 = vadd.f32 %v1220, 1.0
        %v1222 = vrcp.pop %v1221
        %v1223 = vmul.f32 %v1221, %v1222
        %v1224 = vsub.f32 1.0, %v1223
        %v1225 = vmul.f32 %v1222, %v1224
        %v1226 = vadd.f32 %v1222, %v1225
        %vm1227 = vweird.f32 %v1221
        %vm1228 = vweird.f32 %v1222
        %vm1229 = vmor %vm1227, %vm1228
        %v1230 = vsel %vm1229, %v1222, %v1226
        %v1231 = vand.u32 2147483647, %v1221
        %vm1232 = vcmp.eq.f32.partialorder %v1231, 8.507059e+37
        %v1233 = vand.u32 %v1221, 2147483648
        %v1234 = vor.u32 1.1754944e-38, %v1233
        %v1235 = vsel %vm1232, %v1234, %v1230
        %v1236 = vmul.f32 1.0, %v1235
        %v1238 = vperm.slane %v479, 0
        %v1240 = vadd.f32 %v1194, %v1238
        %v1241 = vmul.f32 %v1216, %v1240
        %v1242 = vadd.f32 %v1028, %v1241
        %v1243 = vtanh.pop %v1242
        %v1244 = vsub.f32 %v480, %v1243
        %v1245 = vmul.f32 %v1236, %v1244
        %v1246 = vadd.f32 %v1243, %v1245
        %vm1247 = vcmp.gt.s32.totalorder %v481, 0
        %v1248 = vsel %vm1247, 1, 0
        %v1249 = vcvt.s32.f32 %v1248
        %v1250 = vsub.f32 %v1246, %v480
        %1252 = vset.pattern.permute.xlu0 0
        %1253 = vperm.xlu0 %1252, %v1249
        %v1254 = vpop.permute.xlu0 %1253
        %v1256 = vmul.f32 %v1254, %v1250
        %v1257 = vadd.f32 %v480, %v1256
        %1258 = vst [vmem:[%s7] sm:$0xff] %v1257
        %v1259 = vld [vmem:[#allocation2 + $0x18] sm:$0xff]
        %v1260 = vld [vmem:[#allocation2 + $0x20] sm:$0xff]
        %v1261 = vld [vmem:[#allocation2 + $0x28] sm:$0xff]
        %v1262 = vpack.c.bf16 %v1257, %v1257
        %1263 = vmatpush.bf16.msra.mxu0 %v1131
        %1264 = vmatpush.bf16.msra.mxu0 %v1128
        %1265 = vmatpush.bf16.msra.mxu0 %v1125
        %1266 = vmatpush.bf16.msra.mxu0 %v1122
        %1267 = vmatpush.bf16.msra.mxu0 %v1119
        %1268 = vmatpush.bf16.msra.mxu0 %v1116
        %1269 = vmatpush.bf16.msra.mxu0 %v1113
        %1270 = vmatpush.bf16.msra.mxu0 %v1110
        %1271 = vmatmul.bf16.gmra.mxu0 %v1262
        %v1272 = vpop.f32.mrf.mxu0
        %v1273 = vadd.f32 0.0, %v1272
        %v1274 = vpop.f32.mrf.mxu0
        %1275 = vdwg.mxu0
        %1276 = vmatpush.bf16.msra.mxu0 %v1132
        %1277 = vmatpush.bf16.msra.mxu0 %v1129
        %1278 = vmatpush.bf16.msra.mxu0 %v1126
        %1279 = vmatpush.bf16.msra.mxu0 %v1123
        %1280 = vmatpush.bf16.msra.mxu0 %v1120
        %1281 = vmatpush.bf16.msra.mxu0 %v1117
        %1282 = vmatpush.bf16.msra.mxu0 %v1114
        %1283 = vmatpush.bf16.msra.mxu0 %v1111
        %1284 = vmatmul.bf16.gmra.mxu0 %v1262
        %v1285 = vpop.f32.mrf.mxu0
        %v1286 = vadd.f32 0.0, %v1285
        %v1287 = vpop.f32.mrf.mxu0
        %1288 = vdwg.mxu0
        %1289 = vmatpush.bf16.msra.mxu0 %v1133
        %1290 = vmatpush.bf16.msra.mxu0 %v1130
        %1291 = vmatpush.bf16.msra.mxu0 %v1127
        %1292 = vmatpush.bf16.msra.mxu0 %v1124
        %1293 = vmatpush.bf16.msra.mxu0 %v1121
        %1294 = vmatpush.bf16.msra.mxu0 %v1118
        %1295 = vmatpush.bf16.msra.mxu0 %v1115
        %1296 = vmatpush.bf16.msra.mxu0 %v1112
        %1297 = vmatmul.bf16.gmra.mxu0 %v1262
        %v1298 = vpop.f32.mrf.mxu0
        %v1299 = vadd.f32 0.0, %v1298
        %v1300 = vpop.f32.mrf.mxu0
        %1301 = vdwg.mxu0
        %v1302 = vadd.f32 %v1259, %v1273
        %v1303 = vxor.u32 %v1302, 2147483648
        %v1304 = vmul.f32 %v1303, 1.442695
        %v1305 = vpow.pop %v1304
        %v1306 = vadd.f32 %v1305, 1.0
        %v1307 = vrcp.pop %v1306
        %v1308 = vmul.f32 %v1306, %v1307
        %v1309 = vsub.f32 1.0, %v1308
        %v1310 = vmul.f32 %v1307, %v1309
        %v1311 = vadd.f32 %v1307, %v1310
        %vm1312 = vweird.f32 %v1306
        %vm1313 = vweird.f32 %v1307
        %vm1314 = vmor %vm1312, %vm1313
        %v1315 = vsel %vm1314, %v1307, %v1311
        %v1316 = vand.u32 2147483647, %v1306
        %vm1317 = vcmp.eq.f32.partialorder %v1316, 8.507059e+37
        %v1318 = vand.u32 %v1306, 2147483648
        %v1319 = vor.u32 1.1754944e-38, %v1318
        %v1320 = vsel %vm1317, %v1319, %v1315
        %v1321 = vmul.f32 1.0, %v1320
        %v1322 = vadd.f32 %v1260, %v1286
        %v1323 = vxor.u32 %v1322, 2147483648
        %v1324 = vmul.f32 %v1323, 1.442695
        %v1325 = vpow.pop %v1324
        %v1326 = vadd.f32 %v1325, 1.0
        %v1327 = vrcp.pop %v1326
        %v1328 = vmul.f32 %v1326, %v1327
        %v1329 = vsub.f32 1.0, %v1328
        %v1330 = vmul.f32 %v1327, %v1329
        %v1331 = vadd.f32 %v1327, %v1330
        %vm1332 = vweird.f32 %v1326
        %vm1333 = vweird.f32 %v1327
        %vm1334 = vmor %vm1332, %vm1333
        %v1335 = vsel %vm1334, %v1327, %v1331
        %v1336 = vand.u32 2147483647, %v1326
        %vm1337 = vcmp.eq.f32.partialorder %v1336, 8.507059e+37
        %v1338 = vand.u32 %v1326, 2147483648
        %v1339 = vor.u32 1.1754944e-38, %v1338
        %v1340 = vsel %vm1337, %v1339, %v1335
        %v1341 = vmul.f32 1.0, %v1340
        %v1342 = vadd.f32 %v1299, %v1238
        %v1343 = vmul.f32 %v1321, %v1342
        %v1344 = vadd.f32 %v1261, %v1343
        %v1345 = vtanh.pop %v1344
        %v1346 = vsub.f32 %v1257, %v1345
        %v1347 = vmul.f32 %v1341, %v1346
        %v1348 = vadd.f32 %v1345, %v1347
        %vm1349 = vcmp.gt.s32.totalorder %v481, 1
        %v1350 = vsel %vm1349, 1, 0
        %v1351 = vcvt.s32.f32 %v1350
        %v1352 = vsub.f32 %v1348, %v1257
        %1354 = vset.pattern.permute.xlu0 0
        %1355 = vperm.xlu0 %1354, %v1351
        %v1356 = vpop.permute.xlu0 %1355
        %v1358 = vmul.f32 %v1356, %v1352
        %v1359 = vadd.f32 %v1257, %v1358
        %1360 = vst [vmem:[%s7 + $0x8] sm:$0xff] %v1359
        %v1361 = vld [vmem:[#allocation2 + $0x30] sm:$0xff]
        %v1362 = vld [vmem:[#allocation2 + $0x38] sm:$0xff]
        %v1363 = vld [vmem:[#allocation2 + $0x40] sm:$0xff]
        %v1364 = vpack.c.bf16 %v1359, %v1359
        %1365 = vmatpush.bf16.msra.mxu0 %v1131
        %1366 = vmatpush.bf16.msra.mxu0 %v1128
        %1367 = vmatpush.bf16.msra.mxu0 %v1125
        %1368 = vmatpush.bf16.msra.mxu0 %v1122
        %1369 = vmatpush.bf16.msra.mxu0 %v1119
        %1370 = vmatpush.bf16.msra.mxu0 %v1116
        %1371 = vmatpush.bf16.msra.mxu0 %v1113
        %1372 = vmatpush.bf16.msra.mxu0 %v1110
        %1373 = vmatmul.bf16.gmra.mxu0 %v1364
        %v1374 = vpop.f32.mrf.mxu0
        %v1375 = vadd.f32 0.0, %v1374
        %v1376 = vpop.f32.mrf.mxu0
        %1377 = vdwg.mxu0
        %1378 = vmatpush.bf16.msra.mxu0 %v1132
        %1379 = vmatpush.bf16.msra.mxu0 %v1129
        %1380 = vmatpush.bf16.msra.mxu0 %v1126
        %1381 = vmatpush.bf16.msra.mxu0 %v1123
        %1382 = vmatpush.bf16.msra.mxu0 %v1120
        %1383 = vmatpush.bf16.msra.mxu0 %v1117
        %1384 = vmatpush.bf16.msra.mxu0 %v1114
        %1385 = vmatpush.bf16.msra.mxu0 %v1111
        %1386 = vmatmul.bf16.gmra.mxu0 %v1364
        %v1387 = vpop.f32.mrf.mxu0
        %v1388 = vadd.f32 0.0, %v1387
        %v1389 = vpop.f32.mrf.mxu0
        %1390 = vdwg.mxu0
        %1391 = vmatpush.bf16.msra.mxu0 %v1133
        %1392 = vmatpush.bf16.msra.mxu0 %v1130
        %1393 = vmatpush.bf16.msra.mxu0 %v1127
        %1394 = vmatpush.bf16.msra.mxu0 %v1124
        %1395 = vmatpush.bf16.msra.mxu0 %v1121
        %1396 = vmatpush.bf16.msra.mxu0 %v1118
        %1397 = vmatpush.bf16.msra.mxu0 %v1115
        %1398 = vmatpush.bf16.msra.mxu0 %v1112
        %1399 = vmatmul.bf16.gmra.mxu0 %v1364
        %v1400 = vpop.f32.mrf.mxu0
        %v1401 = vadd.f32 0.0, %v1400
        %v1402 = vpop.f32.mrf.mxu0
        %1403 = vdwg.mxu0
        %v1404 = vadd.f32 %v1361, %v1375
        %v1405 = vxor.u32 %v1404, 2147483648
        %v1406 = vmul.f32 %v1405, 1.442695
        %v1407 = vpow.pop %v1406
        %v1408 = vadd.f32 %v1407, 1.0
        %v1409 = vrcp.pop %v1408
        %v1410 = vmul.f32 %v1408, %v1409
        %v1411 = vsub.f32 1.0, %v1410
        %v1412 = vmul.f32 %v1409, %v1411
        %v1413 = vadd.f32 %v1409, %v1412
        %vm1414 = vweird.f32 %v1408
        %vm1415 = vweird.f32 %v1409
        %vm1416 = vmor %vm1414, %vm1415
        %v1417 = vsel %vm1416, %v1409, %v1413
        %v1418 = vand.u32 2147483647, %v1408
        %vm1419 = vcmp.eq.f32.partialorder %v1418, 8.507059e+37
        %v1420 = vand.u32 %v1408, 2147483648
        %v1421 = vor.u32 1.1754944e-38, %v1420
        %v1422 = vsel %vm1419, %v1421, %v1417
        %v1423 = vmul.f32 1.0, %v1422
        %v1424 = vadd.f32 %v1362, %v1388
        %v1425 = vxor.u32 %v1424, 2147483648
        %v1426 = vmul.f32 %v1425, 1.442695
        %v1427 = vpow.pop %v1426
        %v1428 = vadd.f32 %v1427, 1.0
        %v1429 = vrcp.pop %v1428
        %v1430 = vmul.f32 %v1428, %v1429
        %v1431 = vsub.f32 1.0, %v1430
        %v1432 = vmul.f32 %v1429, %v1431
        %v1433 = vadd.f32 %v1429, %v1432
        %vm1434 = vweird.f32 %v1428
        %vm1435 = vweird.f32 %v1429
        %vm1436 = vmor %vm1434, %vm1435
        %v1437 = vsel %vm1436, %v1429, %v1433
        %v1438 = vand.u32 2147483647, %v1428
        %vm1439 = vcmp.eq.f32.partialorder %v1438, 8.507059e+37
        %v1440 = vand.u32 %v1428, 2147483648
        %v1441 = vor.u32 1.1754944e-38, %v1440
        %v1442 = vsel %vm1439, %v1441, %v1437
        %v1443 = vmul.f32 1.0, %v1442
        %v1444 = vadd.f32 %v1401, %v1238
        %v1445 = vmul.f32 %v1423, %v1444
        %v1446 = vadd.f32 %v1363, %v1445
        %v1447 = vtanh.pop %v1446
        %v1448 = vsub.f32 %v1359, %v1447
        %v1449 = vmul.f32 %v1443, %v1448
        %v1450 = vadd.f32 %v1447, %v1449
        %vm1451 = vcmp.gt.s32.totalorder %v481, 2
        %v1452 = vsel %vm1451, 1, 0
        %v1453 = vcvt.s32.f32 %v1452
        %v1454 = vsub.f32 %v1450, %v1359
        %1456 = vset.pattern.permute.xlu0 0
        %1457 = vperm.xlu0 %1456, %v1453
        %v1458 = vpop.permute.xlu0 %1457
        %v1460 = vmul.f32 %v1458, %v1454
        %v1461 = vadd.f32 %v1359, %v1460
        %1462 = vst [vmem:[%s7 + $0x10] sm:$0xff] %v1461
        %v1463 = vld [vmem:[#allocation2 + $0x48] sm:$0xff]
        %v1464 = vld [vmem:[#allocation2 + $0x50] sm:$0xff]
        %v1465 = vld [vmem:[#allocation2 + $0x58] sm:$0xff]
        %v1466 = vpack.c.bf16 %v1461, %v1461
        %1467 = vmatpush.bf16.msra.mxu0 %v1131
        %1468 = vmatpush.bf16.msra.mxu0 %v1128
        %1469 = vmatpush.bf16.msra.mxu0 %v1125
        %1470 = vmatpush.bf16.msra.mxu0 %v1122
        %1471 = vmatpush.bf16.msra.mxu0 %v1119
        %1472 = vmatpush.bf16.msra.mxu0 %v1116
        %1473 = vmatpush.bf16.msra.mxu0 %v1113
        %1474 = vmatpush.bf16.msra.mxu0 %v1110
        %1475 = vmatmul.bf16.gmra.mxu0 %v1466
        %v1476 = vpop.f32.mrf.mxu0
        %v1477 = vadd.f32 0.0, %v1476
        %v1478 = vpop.f32.mrf.mxu0
        %1479 = vdwg.mxu0
        %1480 = vmatpush.bf16.msra.mxu0 %v1132
        %1481 = vmatpush.bf16.msra.mxu0 %v1129
        %1482 = vmatpush.bf16.msra.mxu0 %v1126
        %1483 = vmatpush.bf16.msra.mxu0 %v1123
        %1484 = vmatpush.bf16.msra.mxu0 %v1120
        %1485 = vmatpush.bf16.msra.mxu0 %v1117
        %1486 = vmatpush.bf16.msra.mxu0 %v1114
        %1487 = vmatpush.bf16.msra.mxu0 %v1111
        %1488 = vmatmul.bf16.gmra.mxu0 %v1466
        %v1489 = vpop.f32.mrf.mxu0
        %v1490 = vadd.f32 0.0, %v1489
        %v1491 = vpop.f32.mrf.mxu0
        %1492 = vdwg.mxu0
        %1493 = vmatpush.bf16.msra.mxu0 %v1133
        %1494 = vmatpush.bf16.msra.mxu0 %v1130
        %1495 = vmatpush.bf16.msra.mxu0 %v1127
        %1496 = vmatpush.bf16.msra.mxu0 %v1124
        %1497 = vmatpush.bf16.msra.mxu0 %v1121
        %1498 = vmatpush.bf16.msra.mxu0 %v1118
        %1499 = vmatpush.bf16.msra.mxu0 %v1115
        %1500 = vmatpush.bf16.msra.mxu0 %v1112
        %1501 = vmatmul.bf16.gmra.mxu0 %v1466
        %v1502 = vpop.f32.mrf.mxu0
        %v1503 = vadd.f32 0.0, %v1502
        %v1504 = vpop.f32.mrf.mxu0
        %1505 = vdwg.mxu0
        %v1506 = vadd.f32 %v1463, %v1477
        %v1507 = vxor.u32 %v1506, 2147483648
        %v1508 = vmul.f32 %v1507, 1.442695
        %v1509 = vpow.pop %v1508
        %v1510 = vadd.f32 %v1509, 1.0
        %v1511 = vrcp.pop %v1510
        %v1512 = vmul.f32 %v1510, %v1511
        %v1513 = vsub.f32 1.0, %v1512
        %v1514 = vmul.f32 %v1511, %v1513
        %v1515 = vadd.f32 %v1511, %v1514
        %vm1516 = vweird.f32 %v1510
        %vm1517 = vweird.f32 %v1511
        %vm1518 = vmor %vm1516, %vm1517
        %v1519 = vsel %vm1518, %v1511, %v1515
        %v1520 = vand.u32 2147483647, %v1510
        %vm1521 = vcmp.eq.f32.partialorder %v1520, 8.507059e+37
        %v1522 = vand.u32 %v1510, 2147483648
        %v1523 = vor.u32 1.1754944e-38, %v1522
        %v1524 = vsel %vm1521, %v1523, %v1519
        %v1525 = vmul.f32 1.0, %v1524
        %v1526 = vadd.f32 %v1464, %v1490
        %v1527 = vxor.u32 %v1526, 2147483648
        %v1528 = vmul.f32 %v1527, 1.442695
        %v1529 = vpow.pop %v1528
        %v1530 = vadd.f32 %v1529, 1.0
        %v1531 = vrcp.pop %v1530
        %v1532 = vmul.f32 %v1530, %v1531
        %v1533 = vsub.f32 1.0, %v1532
        %v1534 = vmul.f32 %v1531, %v1533
        %v1535 = vadd.f32 %v1531, %v1534
        %vm1536 = vweird.f32 %v1530
        %vm1537 = vweird.f32 %v1531
        %vm1538 = vmor %vm1536, %vm1537
        %v1539 = vsel %vm1538, %v1531, %v1535
        %v1540 = vand.u32 2147483647, %v1530
        %vm1541 = vcmp.eq.f32.partialorder %v1540, 8.507059e+37
        %v1542 = vand.u32 %v1530, 2147483648
        %v1543 = vor.u32 1.1754944e-38, %v1542
        %v1544 = vsel %vm1541, %v1543, %v1539
        %v1545 = vmul.f32 1.0, %v1544
        %v1546 = vadd.f32 %v1503, %v1238
        %v1547 = vmul.f32 %v1525, %v1546
        %v1548 = vadd.f32 %v1465, %v1547
        %v1549 = vtanh.pop %v1548
        %v1550 = vsub.f32 %v1461, %v1549
        %v1551 = vmul.f32 %v1545, %v1550
        %v1552 = vadd.f32 %v1549, %v1551
        %vm1553 = vcmp.gt.s32.totalorder %v481, 3
        %v1554 = vsel %vm1553, 1, 0
        %v1555 = vcvt.s32.f32 %v1554
        %v1556 = vsub.f32 %v1552, %v1461
        %1558 = vset.pattern.permute.xlu0 0
        %1559 = vperm.xlu0 %1558, %v1555
        %v1560 = vpop.permute.xlu0 %1559
        %v1562 = vmul.f32 %v1560, %v1556
        %v1563 = vadd.f32 %v1461, %v1562
        %1564 = vst [vmem:[%s7 + $0x18] sm:$0xff] %v1563
        %v1565 = vld [vmem:[#allocation2 + $0x60] sm:$0xff]
        %v1566 = vld [vmem:[#allocation2 + $0x68] sm:$0xff]
        %v1567 = vld [vmem:[#allocation2 + $0x70] sm:$0xff]
        %v1568 = vpack.c.bf16 %v1563, %v1563
        %1569 = vmatpush.bf16.msra.mxu0 %v1131
        %1570 = vmatpush.bf16.msra.mxu0 %v1128
        %1571 = vmatpush.bf16.msra.mxu0 %v1125
        %1572 = vmatpush.bf16.msra.mxu0 %v1122
        %1573 = vmatpush.bf16.msra.mxu0 %v1119
        %1574 = vmatpush.bf16.msra.mxu0 %v1116
        %1575 = vmatpush.bf16.msra.mxu0 %v1113
        %1576 = vmatpush.bf16.msra.mxu0 %v1110
        %1577 = vmatmul.bf16.gmra.mxu0 %v1568
        %v1578 = vpop.f32.mrf.mxu0
        %v1579 = vadd.f32 0.0, %v1578
        %v1580 = vpop.f32.mrf.mxu0
        %1581 = vdwg.mxu0
        %1582 = vmatpush.bf16.msra.mxu0 %v1132
        %1583 = vmatpush.bf16.msra.mxu0 %v1129
        %1584 = vmatpush.bf16.msra.mxu0 %v1126
        %1585 = vmatpush.bf16.msra.mxu0 %v1123
        %1586 = vmatpush.bf16.msra.mxu0 %v1120
        %1587 = vmatpush.bf16.msra.mxu0 %v1117
        %1588 = vmatpush.bf16.msra.mxu0 %v1114
        %1589 = vmatpush.bf16.msra.mxu0 %v1111
        %1590 = vmatmul.bf16.gmra.mxu0 %v1568
        %v1591 = vpop.f32.mrf.mxu0
        %v1592 = vadd.f32 0.0, %v1591
        %v1593 = vpop.f32.mrf.mxu0
        %1594 = vdwg.mxu0
        %1595 = vmatpush.bf16.msra.mxu0 %v1133
        %1596 = vmatpush.bf16.msra.mxu0 %v1130
        %1597 = vmatpush.bf16.msra.mxu0 %v1127
        %1598 = vmatpush.bf16.msra.mxu0 %v1124
        %1599 = vmatpush.bf16.msra.mxu0 %v1121
        %1600 = vmatpush.bf16.msra.mxu0 %v1118
        %1601 = vmatpush.bf16.msra.mxu0 %v1115
        %1602 = vmatpush.bf16.msra.mxu0 %v1112
        %1603 = vmatmul.bf16.gmra.mxu0 %v1568
        %v1604 = vpop.f32.mrf.mxu0
        %v1605 = vadd.f32 0.0, %v1604
        %v1606 = vpop.f32.mrf.mxu0
        %1607 = vdwg.mxu0
        %v1608 = vadd.f32 %v1565, %v1579
        %v1609 = vxor.u32 %v1608, 2147483648
        %v1610 = vmul.f32 %v1609, 1.442695
        %v1611 = vpow.pop %v1610
        %v1612 = vadd.f32 %v1611, 1.0
        %v1613 = vrcp.pop %v1612
        %v1614 = vmul.f32 %v1612, %v1613
        %v1615 = vsub.f32 1.0, %v1614
        %v1616 = vmul.f32 %v1613, %v1615
        %v1617 = vadd.f32 %v1613, %v1616
        %vm1618 = vweird.f32 %v1612
        %vm1619 = vweird.f32 %v1613
        %vm1620 = vmor %vm1618, %vm1619
        %v1621 = vsel %vm1620, %v1613, %v1617
        %v1622 = vand.u32 2147483647, %v1612
        %vm1623 = vcmp.eq.f32.partialorder %v1622, 8.507059e+37
        %v1624 = vand.u32 %v1612, 2147483648
        %v1625 = vor.u32 1.1754944e-38, %v1624
        %v1626 = vsel %vm1623, %v1625, %v1621
        %v1627 = vmul.f32 1.0, %v1626
        %v1628 = vadd.f32 %v1566, %v1592
        %v1629 = vxor.u32 %v1628, 2147483648
        %v1630 = vmul.f32 %v1629, 1.442695
        %v1631 = vpow.pop %v1630
        %v1632 = vadd.f32 %v1631, 1.0
        %v1633 = vrcp.pop %v1632
        %v1634 = vmul.f32 %v1632, %v1633
        %v1635 = vsub.f32 1.0, %v1634
        %v1636 = vmul.f32 %v1633, %v1635
        %v1637 = vadd.f32 %v1633, %v1636
        %vm1638 = vweird.f32 %v1632
        %vm1639 = vweird.f32 %v1633
        %vm1640 = vmor %vm1638, %vm1639
        %v1641 = vsel %vm1640, %v1633, %v1637
        %v1642 = vand.u32 2147483647, %v1632
        %vm1643 = vcmp.eq.f32.partialorder %v1642, 8.507059e+37
        %v1644 = vand.u32 %v1632, 2147483648
        %v1645 = vor.u32 1.1754944e-38, %v1644
        %v1646 = vsel %vm1643, %v1645, %v1641
        %v1647 = vmul.f32 1.0, %v1646
        %v1648 = vadd.f32 %v1605, %v1238
        %v1649 = vmul.f32 %v1627, %v1648
        %v1650 = vadd.f32 %v1567, %v1649
        %v1651 = vtanh.pop %v1650
        %v1652 = vsub.f32 %v1563, %v1651
        %v1653 = vmul.f32 %v1647, %v1652
        %v1654 = vadd.f32 %v1651, %v1653
        %vm1655 = vcmp.gt.s32.totalorder %v481, 4
        %v1656 = vsel %vm1655, 1, 0
        %v1657 = vcvt.s32.f32 %v1656
        %v1658 = vsub.f32 %v1654, %v1563
        %1660 = vset.pattern.permute.xlu0 0
        %1661 = vperm.xlu0 %1660, %v1657
        %v1662 = vpop.permute.xlu0 %1661
        %v1664 = vmul.f32 %v1662, %v1658
        %v1665 = vadd.f32 %v1563, %v1664
        %1666 = vst [vmem:[%s7 + $0x20] sm:$0xff] %v1665
        %v1667 = vld [vmem:[#allocation2 + $0x78] sm:$0xff]
        %v1668 = vld [vmem:[#allocation2 + $0x80] sm:$0xff]
        %v1669 = vld [vmem:[#allocation2 + $0x88] sm:$0xff]
        %v1670 = vpack.c.bf16 %v1665, %v1665
        %1671 = vmatpush.bf16.msra.mxu0 %v1131
        %1672 = vmatpush.bf16.msra.mxu0 %v1128
        %1673 = vmatpush.bf16.msra.mxu0 %v1125
        %1674 = vmatpush.bf16.msra.mxu0 %v1122
        %1675 = vmatpush.bf16.msra.mxu0 %v1119
        %1676 = vmatpush.bf16.msra.mxu0 %v1116
        %1677 = vmatpush.bf16.msra.mxu0 %v1113
        %1678 = vmatpush.bf16.msra.mxu0 %v1110
        %1679 = vmatmul.bf16.gmra.mxu0 %v1670
        %v1680 = vpop.f32.mrf.mxu0
        %v1681 = vadd.f32 0.0, %v1680
        %v1682 = vpop.f32.mrf.mxu0
        %1683 = vdwg.mxu0
        %1684 = vmatpush.bf16.msra.mxu0 %v1132
        %1685 = vmatpush.bf16.msra.mxu0 %v1129
        %1686 = vmatpush.bf16.msra.mxu0 %v1126
        %1687 = vmatpush.bf16.msra.mxu0 %v1123
        %1688 = vmatpush.bf16.msra.mxu0 %v1120
        %1689 = vmatpush.bf16.msra.mxu0 %v1117
        %1690 = vmatpush.bf16.msra.mxu0 %v1114
        %1691 = vmatpush.bf16.msra.mxu0 %v1111
        %1692 = vmatmul.bf16.gmra.mxu0 %v1670
        %v1693 = vpop.f32.mrf.mxu0
        %v1694 = vadd.f32 0.0, %v1693
        %v1695 = vpop.f32.mrf.mxu0
        %1696 = vdwg.mxu0
        %1697 = vmatpush.bf16.msra.mxu0 %v1133
        %1698 = vmatpush.bf16.msra.mxu0 %v1130
        %1699 = vmatpush.bf16.msra.mxu0 %v1127
        %1700 = vmatpush.bf16.msra.mxu0 %v1124
        %1701 = vmatpush.bf16.msra.mxu0 %v1121
        %1702 = vmatpush.bf16.msra.mxu0 %v1118
        %1703 = vmatpush.bf16.msra.mxu0 %v1115
        %1704 = vmatpush.bf16.msra.mxu0 %v1112
        %1705 = vmatmul.bf16.gmra.mxu0 %v1670
        %v1706 = vpop.f32.mrf.mxu0
        %v1707 = vadd.f32 0.0, %v1706
        %v1708 = vpop.f32.mrf.mxu0
        %1709 = vdwg.mxu0
        %v1710 = vadd.f32 %v1667, %v1681
        %v1711 = vxor.u32 %v1710, 2147483648
        %v1712 = vmul.f32 %v1711, 1.442695
        %v1713 = vpow.pop %v1712
        %v1714 = vadd.f32 %v1713, 1.0
        %v1715 = vrcp.pop %v1714
        %v1716 = vmul.f32 %v1714, %v1715
        %v1717 = vsub.f32 1.0, %v1716
        %v1718 = vmul.f32 %v1715, %v1717
        %v1719 = vadd.f32 %v1715, %v1718
        %vm1720 = vweird.f32 %v1714
        %vm1721 = vweird.f32 %v1715
        %vm1722 = vmor %vm1720, %vm1721
        %v1723 = vsel %vm1722, %v1715, %v1719
        %v1724 = vand.u32 2147483647, %v1714
        %vm1725 = vcmp.eq.f32.partialorder %v1724, 8.507059e+37
        %v1726 = vand.u32 %v1714, 2147483648
        %v1727 = vor.u32 1.1754944e-38, %v1726
        %v1728 = vsel %vm1725, %v1727, %v1723
        %v1729 = vmul.f32 1.0, %v1728
        %v1730 = vadd.f32 %v1668, %v1694
        %v1731 = vxor.u32 %v1730, 2147483648
        %v1732 = vmul.f32 %v1731, 1.442695
        %v1733 = vpow.pop %v1732
        %v1734 = vadd.f32 %v1733, 1.0
        %v1735 = vrcp.pop %v1734
        %v1736 = vmul.f32 %v1734, %v1735
        %v1737 = vsub.f32 1.0, %v1736
        %v1738 = vmul.f32 %v1735, %v1737
        %v1739 = vadd.f32 %v1735, %v1738
        %vm1740 = vweird.f32 %v1734
        %vm1741 = vweird.f32 %v1735
        %vm1742 = vmor %vm1740, %vm1741
        %v1743 = vsel %vm1742, %v1735, %v1739
        %v1744 = vand.u32 2147483647, %v1734
        %vm1745 = vcmp.eq.f32.partialorder %v1744, 8.507059e+37
        %v1746 = vand.u32 %v1734, 2147483648
        %v1747 = vor.u32 1.1754944e-38, %v1746
        %v1748 = vsel %vm1745, %v1747, %v1743
        %v1749 = vmul.f32 1.0, %v1748
        %v1750 = vadd.f32 %v1707, %v1238
        %v1751 = vmul.f32 %v1729, %v1750
        %v1752 = vadd.f32 %v1669, %v1751
        %v1753 = vtanh.pop %v1752
        %v1754 = vsub.f32 %v1665, %v1753
        %v1755 = vmul.f32 %v1749, %v1754
        %v1756 = vadd.f32 %v1753, %v1755
        %vm1757 = vcmp.gt.s32.totalorder %v481, 5
        %v1758 = vsel %vm1757, 1, 0
        %v1759 = vcvt.s32.f32 %v1758
        %v1760 = vsub.f32 %v1756, %v1665
        %1762 = vset.pattern.permute.xlu0 0
        %1763 = vperm.xlu0 %1762, %v1759
        %v1764 = vpop.permute.xlu0 %1763
        %v1766 = vmul.f32 %v1764, %v1760
        %v1767 = vadd.f32 %v1665, %v1766
        %1768 = vst [vmem:[%s7 + $0x28] sm:$0xff] %v1767
        %v1769 = vld [vmem:[#allocation2 + $0x90] sm:$0xff]
        %v1770 = vld [vmem:[#allocation2 + $0x98] sm:$0xff]
        %v1771 = vld [vmem:[#allocation2 + $0xa0] sm:$0xff]
        %v1772 = vpack.c.bf16 %v1767, %v1767
        %1773 = vmatpush.bf16.msra.mxu0 %v1131
        %1774 = vmatpush.bf16.msra.mxu0 %v1128
        %1775 = vmatpush.bf16.msra.mxu0 %v1125
        %1776 = vmatpush.bf16.msra.mxu0 %v1122
        %1777 = vmatpush.bf16.msra.mxu0 %v1119
        %1778 = vmatpush.bf16.msra.mxu0 %v1116
        %1779 = vmatpush.bf16.msra.mxu0 %v1113
        %1780 = vmatpush.bf16.msra.mxu0 %v1110
        %1781 = vmatmul.bf16.gmra.mxu0 %v1772
        %v1782 = vpop.f32.mrf.mxu0
        %v1783 = vadd.f32 0.0, %v1782
        %v1784 = vpop.f32.mrf.mxu0
        %1785 = vdwg.mxu0
        %1786 = vmatpush.bf16.msra.mxu0 %v1132
        %1787 = vmatpush.bf16.msra.mxu0 %v1129
        %1788 = vmatpush.bf16.msra.mxu0 %v1126
        %1789 = vmatpush.bf16.msra.mxu0 %v1123
        %1790 = vmatpush.bf16.msra.mxu0 %v1120
        %1791 = vmatpush.bf16.msra.mxu0 %v1117
        %1792 = vmatpush.bf16.msra.mxu0 %v1114
        %1793 = vmatpush.bf16.msra.mxu0 %v1111
        %1794 = vmatmul.bf16.gmra.mxu0 %v1772
        %v1795 = vpop.f32.mrf.mxu0
        %v1796 = vadd.f32 0.0, %v1795
        %v1797 = vpop.f32.mrf.mxu0
        %1798 = vdwg.mxu0
        %1799 = vmatpush.bf16.msra.mxu0 %v1133
        %1800 = vmatpush.bf16.msra.mxu0 %v1130
        %1801 = vmatpush.bf16.msra.mxu0 %v1127
        %1802 = vmatpush.bf16.msra.mxu0 %v1124
        %1803 = vmatpush.bf16.msra.mxu0 %v1121
        %1804 = vmatpush.bf16.msra.mxu0 %v1118
        %1805 = vmatpush.bf16.msra.mxu0 %v1115
        %1806 = vmatpush.bf16.msra.mxu0 %v1112
        %1807 = vmatmul.bf16.gmra.mxu0 %v1772
        %v1808 = vpop.f32.mrf.mxu0
        %v1809 = vadd.f32 0.0, %v1808
        %v1810 = vpop.f32.mrf.mxu0
        %1811 = vdwg.mxu0
        %v1812 = vadd.f32 %v1769, %v1783
        %v1813 = vxor.u32 %v1812, 2147483648
        %v1814 = vmul.f32 %v1813, 1.442695
        %v1815 = vpow.pop %v1814
        %v1816 = vadd.f32 %v1815, 1.0
        %v1817 = vrcp.pop %v1816
        %v1818 = vmul.f32 %v1816, %v1817
        %v1819 = vsub.f32 1.0, %v1818
        %v1820 = vmul.f32 %v1817, %v1819
        %v1821 = vadd.f32 %v1817, %v1820
        %vm1822 = vweird.f32 %v1816
        %vm1823 = vweird.f32 %v1817
        %vm1824 = vmor %vm1822, %vm1823
        %v1825 = vsel %vm1824, %v1817, %v1821
        %v1826 = vand.u32 2147483647, %v1816
        %vm1827 = vcmp.eq.f32.partialorder %v1826, 8.507059e+37
        %v1828 = vand.u32 %v1816, 2147483648
        %v1829 = vor.u32 1.1754944e-38, %v1828
        %v1830 = vsel %vm1827, %v1829, %v1825
        %v1831 = vmul.f32 1.0, %v1830
        %v1832 = vadd.f32 %v1770, %v1796
        %v1833 = vxor.u32 %v1832, 2147483648
        %v1834 = vmul.f32 %v1833, 1.442695
        %v1835 = vpow.pop %v1834
        %v1836 = vadd.f32 %v1835, 1.0
        %v1837 = vrcp.pop %v1836
        %v1838 = vmul.f32 %v1836, %v1837
        %v1839 = vsub.f32 1.0, %v1838
        %v1840 = vmul.f32 %v1837, %v1839
        %v1841 = vadd.f32 %v1837, %v1840
        %vm1842 = vweird.f32 %v1836
        %vm1843 = vweird.f32 %v1837
        %vm1844 = vmor %vm1842, %vm1843
        %v1845 = vsel %vm1844, %v1837, %v1841
        %v1846 = vand.u32 2147483647, %v1836
        %vm1847 = vcmp.eq.f32.partialorder %v1846, 8.507059e+37
        %v1848 = vand.u32 %v1836, 2147483648
        %v1849 = vor.u32 1.1754944e-38, %v1848
        %v1850 = vsel %vm1847, %v1849, %v1845
        %v1851 = vmul.f32 1.0, %v1850
        %v1852 = vadd.f32 %v1809, %v1238
        %v1853 = vmul.f32 %v1831, %v1852
        %v1854 = vadd.f32 %v1771, %v1853
        %v1855 = vtanh.pop %v1854
        %v1856 = vsub.f32 %v1767, %v1855
        %v1857 = vmul.f32 %v1851, %v1856
        %v1858 = vadd.f32 %v1855, %v1857
        %vm1859 = vcmp.gt.s32.totalorder %v481, 6
        %v1860 = vsel %vm1859, 1, 0
        %v1861 = vcvt.s32.f32 %v1860
        %v1862 = vsub.f32 %v1858, %v1767
        %1864 = vset.pattern.permute.xlu0 0
        %1865 = vperm.xlu0 %1864, %v1861
        %v1866 = vpop.permute.xlu0 %1865
        %v1868 = vmul.f32 %v1866, %v1862
        %v1869 = vadd.f32 %v1767, %v1868
        %1870 = vst [vmem:[%s7 + $0x30] sm:$0xff] %v1869
        %v1871 = vld [vmem:[#allocation2 + $0xa8] sm:$0xff]
        %v1872 = vld [vmem:[#allocation2 + $0xb0] sm:$0xff]
        %v1873 = vld [vmem:[#allocation2 + $0xb8] sm:$0xff]
        %v1874 = vpack.c.bf16 %v1869, %v1869
        %1875 = vmatpush.bf16.msra.mxu0 %v1131
        %1876 = vmatpush.bf16.msra.mxu0 %v1128
        %1877 = vmatpush.bf16.msra.mxu0 %v1125
        %1878 = vmatpush.bf16.msra.mxu0 %v1122
        %1879 = vmatpush.bf16.msra.mxu0 %v1119
        %1880 = vmatpush.bf16.msra.mxu0 %v1116
        %1881 = vmatpush.bf16.msra.mxu0 %v1113
        %1882 = vmatpush.bf16.msra.mxu0 %v1110
        %1883 = vmatmul.bf16.gmra.mxu0 %v1874
        %v1884 = vpop.f32.mrf.mxu0
        %v1885 = vadd.f32 0.0, %v1884
        %v1886 = vpop.f32.mrf.mxu0
        %1887 = vdwg.mxu0
        %1888 = vmatpush.bf16.msra.mxu0 %v1132
        %1889 = vmatpush.bf16.msra.mxu0 %v1129
        %1890 = vmatpush.bf16.msra.mxu0 %v1126
        %1891 = vmatpush.bf16.msra.mxu0 %v1123
        %1892 = vmatpush.bf16.msra.mxu0 %v1120
        %1893 = vmatpush.bf16.msra.mxu0 %v1117
        %1894 = vmatpush.bf16.msra.mxu0 %v1114
        %1895 = vmatpush.bf16.msra.mxu0 %v1111
        %1896 = vmatmul.bf16.gmra.mxu0 %v1874
        %v1897 = vpop.f32.mrf.mxu0
        %v1898 = vadd.f32 0.0, %v1897
        %v1899 = vpop.f32.mrf.mxu0
        %1900 = vdwg.mxu0
        %1901 = vmatpush.bf16.msra.mxu0 %v1133
        %1902 = vmatpush.bf16.msra.mxu0 %v1130
        %1903 = vmatpush.bf16.msra.mxu0 %v1127
        %1904 = vmatpush.bf16.msra.mxu0 %v1124
        %1905 = vmatpush.bf16.msra.mxu0 %v1121
        %1906 = vmatpush.bf16.msra.mxu0 %v1118
        %1907 = vmatpush.bf16.msra.mxu0 %v1115
        %1908 = vmatpush.bf16.msra.mxu0 %v1112
        %1909 = vmatmul.bf16.gmra.mxu0 %v1874
        %v1910 = vpop.f32.mrf.mxu0
        %v1911 = vadd.f32 0.0, %v1910
        %v1912 = vpop.f32.mrf.mxu0
        %1913 = vdwg.mxu0
        %v1914 = vadd.f32 %v1871, %v1885
        %v1915 = vxor.u32 %v1914, 2147483648
        %v1916 = vmul.f32 %v1915, 1.442695
        %v1917 = vpow.pop %v1916
        %v1918 = vadd.f32 %v1917, 1.0
        %v1919 = vrcp.pop %v1918
        %v1920 = vmul.f32 %v1918, %v1919
        %v1921 = vsub.f32 1.0, %v1920
        %v1922 = vmul.f32 %v1919, %v1921
        %v1923 = vadd.f32 %v1919, %v1922
        %vm1924 = vweird.f32 %v1918
        %vm1925 = vweird.f32 %v1919
        %vm1926 = vmor %vm1924, %vm1925
        %v1927 = vsel %vm1926, %v1919, %v1923
        %v1928 = vand.u32 2147483647, %v1918
        %vm1929 = vcmp.eq.f32.partialorder %v1928, 8.507059e+37
        %v1930 = vand.u32 %v1918, 2147483648
        %v1931 = vor.u32 1.1754944e-38, %v1930
        %v1932 = vsel %vm1929, %v1931, %v1927
        %v1933 = vmul.f32 1.0, %v1932
        %v1934 = vadd.f32 %v1872, %v1898
        %v1935 = vxor.u32 %v1934, 2147483648
        %v1936 = vmul.f32 %v1935, 1.442695
        %v1937 = vpow.pop %v1936
        %v1938 = vadd.f32 %v1937, 1.0
        %v1939 = vrcp.pop %v1938
        %v1940 = vmul.f32 %v1938, %v1939
        %v1941 = vsub.f32 1.0, %v1940
        %v1942 = vmul.f32 %v1939, %v1941
        %v1943 = vadd.f32 %v1939, %v1942
        %vm1944 = vweird.f32 %v1938
        %vm1945 = vweird.f32 %v1939
        %vm1946 = vmor %vm1944, %vm1945
        %v1947 = vsel %vm1946, %v1939, %v1943
        %v1948 = vand.u32 2147483647, %v1938
        %vm1949 = vcmp.eq.f32.partialorder %v1948, 8.507059e+37
        %v1950 = vand.u32 %v1938, 2147483648
        %v1951 = vor.u32 1.1754944e-38, %v1950
        %v1952 = vsel %vm1949, %v1951, %v1947
        %v1953 = vmul.f32 1.0, %v1952
        %v1954 = vadd.f32 %v1911, %v1238
        %v1955 = vmul.f32 %v1933, %v1954
        %v1956 = vadd.f32 %v1873, %v1955
        %v1957 = vtanh.pop %v1956
        %v1958 = vsub.f32 %v1869, %v1957
        %v1959 = vmul.f32 %v1953, %v1958
        %v1960 = vadd.f32 %v1957, %v1959
        %vm1961 = vcmp.gt.s32.totalorder %v481, 7
        %v1962 = vsel %vm1961, 1, 0
        %v1963 = vcvt.s32.f32 %v1962
        %v1964 = vsub.f32 %v1960, %v1869
        %1966 = vset.pattern.permute.xlu0 0
        %1967 = vperm.xlu0 %1966, %v1963
        %v1968 = vpop.permute.xlu0 %1967
        %v1970 = vmul.f32 %v1968, %v1964
        %v1971 = vadd.f32 %v1869, %v1970
        %1972 = vst [vmem:[%s7 + $0x38] sm:$0xff] %v1971
        %1973 = vst [vmem:[%s413] sm:$0xff] %v1971
        %p1974 = scmp.lt.s32.totalorder %s26, 1
        %s1975 = scalar_select %p1974, %s26, 1
        %s1976 = smul.addr %s1975, 8
        %s1977 = scalar_lea.vmem %s8, %s1976
        // Predicated region
        $region65: #{decoder_gru_forward.1} parent=47 // pred_check
          %p1978 = pneg %p211
        $region66: #{decoder_gru_forward.1} parent=47 // pred_check_branch
          %1980 = sbr.rel (%p1978) target = $region68
        $region67: #{decoder_gru_forward.1} parent=47 // pred_region
          _
        $region68: #{decoder_gru_forward.1} parent=47 // pred_fallthru
          _
        // Predicated region
        $region69: #{decoder_gru_forward.1} parent=47 // pred_check
          %p1981 = pneg %p237
        $region70: #{decoder_gru_forward.1} parent=47 // pred_check_branch
          %1983 = sbr.rel (%p1981) target = $region72
        $region71: #{decoder_gru_forward.1} parent=47 // pred_region
          _
        $region72: #{decoder_gru_forward.1} parent=47 // pred_fallthru
          _
        // Predicated region
        $region73: #{decoder_gru_forward.1} parent=47 // pred_check
          %p1984 = pneg %p211
        $region74: #{decoder_gru_forward.1} parent=47 // pred_check_branch
          %1986 = sbr.rel (%p1984) target = $region76
        $region75: #{decoder_gru_forward.1} parent=47 // pred_region
          _
        $region76: #{decoder_gru_forward.1} parent=47 // pred_fallthru
          _
      $region48: #{decoder_gru_forward.1} parent=5 // pred_fallthru
        _
      %p1987 = scmp.le.s32.totalorder 2, %s21
      // Predicated region
      $region77: #{decoder_gru_forward.1} parent=5 // pred_check
        %p1988 = pneg %p1987
      $region78: #{decoder_gru_forward.1} parent=5 // pred_check_branch
        %1990 = sbr.rel (%p1988) target = $region80
      $region79: #{decoder_gru_forward.1} parent=5 // pred_region
        %s1991 = ssub.s32 %s21, 2
        // Predicated region
        $region81: #{decoder_gru_forward.1} parent=79 // pred_check
          %p1992 = pneg %p243
        $region82: #{decoder_gru_forward.1} parent=79 // pred_check_branch
          %1994 = sbr.rel (%p1992) target = $region84
        $region83: #{decoder_gru_forward.1} parent=79 // pred_region
          %p1995 = scmp.lt.s32.totalorder %s27, 1
          %s1996 = scalar_select %p1995, %s27, 1
          %s1997 = smul.addr %s1996, 8
          %s1998 = scalar_lea.vmem %s8, %s1997
        $region84: #{decoder_gru_forward.1} parent=79 // pred_fallthru
          _
      $region80: #{decoder_gru_forward.1} parent=5 // pred_fallthru
        _
    $region6: #{decoder_gru_forward.1} parent=1 // loop_footer
      %s25 = sadd.s32 1, %s21
    $region7: #{decoder_gru_forward.1} parent=1 // loop_footer_branch
      %20 = sbr.rel target = $region3
    $region8: #{decoder_gru_forward.1} parent=1 // loop_exit
      _
    %1999 = vsyncpa [#allocation4], 1
    %s2000 = scalar_lea.sflag [#allocation4], 1
    %2001 = vsyncpa %s2000, 1
    %2002 = vsyncpa [#allocation6], 1
    %s2003 = scalar_lea.sflag [#allocation6], 1
    %2004 = vsyncpa %s2003, 1

</llo_original>
